<compile_context>
chip_gen: v5e
topology: v5e:2x2
jax: 0.10.0
libtpu: 0.0.40
codegen_flags: <defaults>
</compile_context>

<pallas_src>
import functools

import jax
import jax.numpy as jnp
from jax.experimental import pallas as pl
from jax.experimental.pallas import tpu as pltpu


def _ffn_kernel(x_ref, g_ref, b_ref, w1_ref, b1_ref, w2_ref, b2_ref, o_ref,
                *, eps: float):
    # ---- LayerNorm over last dim, f32 (features on the lane axis) ----
    x = x_ref[...].astype(jnp.float32)                        # (tm, D)
    mean = jnp.mean(x, axis=-1, keepdims=True)
    cen = x - mean
    var = jnp.mean(cen * cen, axis=-1, keepdims=True)
    xn = cen * jax.lax.rsqrt(var + eps)
    xn = xn * g_ref[...] + b_ref[...]                          # (tm, D) f32

    # ---- Linear1 (D -> 4D): bf16 operands on the MXU, f32 accumulation ----
    h = jnp.dot(xn.astype(jnp.bfloat16), w1_ref[...],
                preferred_element_type=jnp.float32)
    h = h + b1_ref[...]                                        # (tm, H) f32
    h = h * jax.nn.sigmoid(h)                                  # SiLU (EUP)

    # TODO(synk): dropout1/dropout2 are identity (eval mode); training-mode
    # stochastic masking would use pltpu.prng_seed + pltpu.prng_random_bits.

    # ---- Linear2 (4D -> D): bf16 operands, f32 accumulation ----
    y = jnp.dot(h.astype(jnp.bfloat16), w2_ref[...],
                preferred_element_type=jnp.float32)
    y = y + b2_ref[...]                                        # (tm, D) f32

    o_ref[...] = y.astype(o_ref.dtype)


def feed_forward_module(x, gamma, beta, w1, b1, w2, b2, *,
                        eps: float = 1e-5, tm: int | None = None):
    """x: (B, S, D).  w1: (D, 4D), w2: (4D, D) (already transposed vs torch)."""
    B, S, D = x.shape
    H = w1.shape[1]
    M = B * S

    if tm is None:
        tm = 512
        # Keep >=2 grid steps when M allows (megacore on v7x), but never go
        # below the MXU-friendly 128-row tile height.
        while tm > 128 and pl.cdiv(M, tm) < 2:
            tm //= 2
    tm = max(8, tm)

    grid_m = pl.cdiv(M, tm)
    Mp = grid_m * tm

    x2 = x.reshape(M, D)
    if Mp != M:
        x2 = jnp.pad(x2, ((0, Mp - M), (0, 0)))    # padded rows sliced off below

    g2 = gamma.reshape(1, D).astype(jnp.float32)
    be2 = beta.reshape(1, D).astype(jnp.float32)
    b1_2 = b1.reshape(1, H).astype(jnp.float32)
    b2_2 = b2.reshape(1, D).astype(jnp.float32)
    w1_b = w1.astype(jnp.bfloat16)
    w2_b = w2.astype(jnp.bfloat16)

    kernel = functools.partial(_ffn_kernel, eps=eps)

    itemsize = jnp.dtype(x.dtype).itemsize
    cost = pl.CostEstimate(
        flops=4 * Mp * D * H,                       # two (Mp,D,H) matmuls
        transcendentals=Mp * H,                     # sigmoid in SiLU
        bytes_accessed=(Mp * D * itemsize           # x in
                        + Mp * D * itemsize         # y out
                        + 2 * (D * H * 2)           # bf16 w1 + w2
                        + (2 * D + H + D) * 4),     # gamma/beta/b1/b2
    )

    out = pl.pallas_call(
        kernel,
        out_shape=jax.ShapeDtypeStruct((Mp, D), x.dtype),
        grid_spec=pltpu.PrefetchScalarGridSpec(
            num_scalar_prefetch=0,
            grid=(grid_m,),
            in_specs=[
                pl.BlockSpec((tm, D), lambda i: (i, 0)),   # activation rows
                pl.BlockSpec((1, D), lambda i: (0, 0)),    # ln gamma
                pl.BlockSpec((1, D), lambda i: (0, 0)),    # ln beta
                pl.BlockSpec((D, H), lambda i: (0, 0)),    # w1 (bf16, resident)
                pl.BlockSpec((1, H), lambda i: (0, 0)),    # b1
                pl.BlockSpec((H, D), lambda i: (0, 0)),    # w2 (bf16, resident)
                pl.BlockSpec((1, D), lambda i: (0, 0)),    # b2
            ],
            out_specs=pl.BlockSpec((tm, D), lambda i: (i, 0)),
        ),
        compiler_params=pltpu.CompilerParams(
            dimension_semantics=("parallel",),
            vmem_limit_bytes=64 * 1024 * 1024),
        cost_estimate=cost,
    )(x2, g2, be2, w1_b, b1_2, w2_b, b2_2)

    if Mp != M:
        out = out[:M]
    return out.reshape(B, S, D)


def _reference(x, gamma, beta, w1, b1, w2, b2, eps=1e-5):
    # Matches the kernel's precision policy: f32 LN/bias/SiLU, bf16 matmul
    # operands with f32 accumulation.
    xf = x.astype(jnp.float32)
    mean = jnp.mean(xf, axis=-1, keepdims=True)
    var = jnp.mean((xf - mean) ** 2, axis=-1, keepdims=True)
    xn = (xf - mean) * jax.lax.rsqrt(var + eps) * gamma + beta
    h = jnp.dot(xn.astype(jnp.bfloat16), w1.astype(jnp.bfloat16),
                preferred_element_type=jnp.float32) + b1
    h = h * jax.nn.sigmoid(h)
    y = jnp.dot(h.astype(jnp.bfloat16), w2.astype(jnp.bfloat16),
                preferred_element_type=jnp.float32) + b2
    return y.astype(x.dtype)


if __name__ == "__main__":
    # Small-but-lane-dense shapes: batch=4, seq=64, input_length=128 (hidden=512).
    B, S, D = 4, 64, 128
    H = 4 * D

    key = jax.random.PRNGKey(0)
    kx, kg, kb, kw1, kb1, kw2, kb2 = jax.random.split(key, 7)

    x = jax.random.normal(kx, (B, S, D), dtype=jnp.float32)
    gamma = 1.0 + 0.1 * jax.random.normal(kg, (D,), dtype=jnp.float32)
    beta = 0.1 * jax.random.normal(kb, (D,), dtype=jnp.float32)
    # torch nn.Linear stores weight as (out, in); we keep (in, out) layout.
    w1 = jax.random.normal(kw1, (D, H), dtype=jnp.float32) / jnp.sqrt(D)
    b1 = 0.01 * jax.random.normal(kb1, (H,), dtype=jnp.float32)
    w2 = jax.random.normal(kw2, (H, D), dtype=jnp.float32) / jnp.sqrt(H)
    b2 = 0.01 * jax.random.normal(kb2, (D,), dtype=jnp.float32)

    out = feed_forward_module(x, gamma, beta, w1, b1, w2, b2)
    out = jax.block_until_ready(out)
    ref = _reference(x, gamma, beta, w1, b1, w2, b2)
    assert out.shape == (B, S, D)
    assert jnp.allclose(out, ref, atol=2e-3, rtol=2e-3), "mismatch vs reference"

    # Ragged row count (exercises the pad + slice path, M not a multiple of tm).
    x_r = x[:, :50]
    out_r = jax.block_until_ready(
        feed_forward_module(x_r, gamma, beta, w1, b1, w2, b2))
    ref_r = _reference(x_r, gamma, beta, w1, b1, w2, b2)
    assert out_r.shape == (B, 50, D)
    assert jnp.allclose(out_r, ref_r, atol=2e-3, rtol=2e-3), "ragged mismatch"

    print("KERNEL_OK")
</pallas_src>

<mosaic_0001>
module attributes {stable_mosaic.version = 11 : i64} {
  func.func @_ffn_kernel(%arg0: i32, %arg1: memref<128x128xf32, #tpu.memory_space<vmem>>, %arg2: memref<1x128xf32, #tpu.memory_space<vmem>>, %arg3: memref<1x128xf32, #tpu.memory_space<vmem>>, %arg4: memref<128x512xbf16, #tpu.memory_space<vmem>>, %arg5: memref<1x512xf32, #tpu.memory_space<vmem>>, %arg6: memref<512x128xbf16, #tpu.memory_space<vmem>>, %arg7: memref<1x128xf32, #tpu.memory_space<vmem>>, %arg8: memref<128x128xf32, #tpu.memory_space<vmem>>) attributes {dimension_semantics = [#tpu.dimension_semantics<parallel>], iteration_bounds = array<i64: 2>, scalar_prefetch = 0 : i64, scratch_operands = 0 : i64, tpu.core_type = #tpu.core_type<tc>, window_params = [{transform_indices = @transform_0, window_bounds = array<i64: 128, 128>}, {pipeline_mode = #tpu.pipeline_mode<synchronous>, transform_indices = @transform_1, window_bounds = array<i64: 1, 128>}, {pipeline_mode = #tpu.pipeline_mode<synchronous>, transform_indices = @transform_2, window_bounds = array<i64: 1, 128>}, {pipeline_mode = #tpu.pipeline_mode<synchronous>, transform_indices = @transform_3, window_bounds = array<i64: 128, 512>}, {pipeline_mode = #tpu.pipeline_mode<synchronous>, transform_indices = @transform_4, window_bounds = array<i64: 1, 512>}, {pipeline_mode = #tpu.pipeline_mode<synchronous>, transform_indices = @transform_5, window_bounds = array<i64: 512, 128>}, {pipeline_mode = #tpu.pipeline_mode<synchronous>, transform_indices = @transform_6, window_bounds = array<i64: 1, 128>}, {transform_indices = @transform_7, window_bounds = array<i64: 128, 128>}]} {
    %c0 = arith.constant 0 : index
    %c0_0 = arith.constant 0 : index
    %0 = vector.load %arg1[%c0, %c0_0] : memref<128x128xf32, #tpu.memory_space<vmem>>, vector<128x128xf32>
    %cst = arith.constant dense<0.000000e+00> : vector<128xf32>
    %1 = vector.multi_reduction <add>, %0, %cst [1] : vector<128x128xf32> to vector<128xf32>
    %2 = vector.shape_cast %1 : vector<128xf32> to vector<128x1xf32>
    %cst_1 = arith.constant 1.280000e+02 : f32
    %3 = vector.broadcast %cst_1 : f32 to vector<128x1xf32>
    %4 = arith.divf %2, %3 : vector<128x1xf32>
    %5 = vector.broadcast %4 : vector<128x1xf32> to vector<128x128xf32>
    %6 = arith.subf %0, %5 : vector<128x128xf32>
    %7 = arith.mulf %6, %6 : vector<128x128xf32>
    %cst_2 = arith.constant dense<0.000000e+00> : vector<128xf32>
    %8 = vector.multi_reduction <add>, %7, %cst_2 [1] : vector<128x128xf32> to vector<128xf32>
    %9 = vector.shape_cast %8 : vector<128xf32> to vector<128x1xf32>
    %cst_3 = arith.constant 1.280000e+02 : f32
    %10 = vector.broadcast %cst_3 : f32 to vector<128x1xf32>
    %11 = arith.divf %9, %10 : vector<128x1xf32>
    %cst_4 = arith.constant 9.99999974E-6 : f32
    %12 = vector.broadcast %cst_4 : f32 to vector<128x1xf32>
    %13 = arith.addf %11, %12 : vector<128x1xf32>
    %14 = math.rsqrt %13 : vector<128x1xf32>
    %15 = vector.broadcast %14 : vector<128x1xf32> to vector<128x128xf32>
    %16 = arith.mulf %6, %15 : vector<128x128xf32>
    %c0_5 = arith.constant 0 : index
    %c0_6 = arith.constant 0 : index
    %17 = vector.load %arg2[%c0_5, %c0_6] : memref<1x128xf32, #tpu.memory_space<vmem>>, vector<1x128xf32>
    %18 = vector.broadcast %17 : vector<1x128xf32> to vector<128x128xf32>
    %19 = arith.mulf %16, %18 : vector<128x128xf32>
    %c0_7 = arith.constant 0 : index
    %c0_8 = arith.constant 0 : index
    %20 = vector.load %arg3[%c0_7, %c0_8] : memref<1x128xf32, #tpu.memory_space<vmem>>, vector<1x128xf32>
    %21 = vector.broadcast %20 : vector<1x128xf32> to vector<128x128xf32>
    %22 = arith.addf %19, %21 : vector<128x128xf32>
    %23 = arith.truncf %22 : vector<128x128xf32> to vector<128x128xbf16>
    %c0_9 = arith.constant 0 : index
    %c0_10 = arith.constant 0 : index
    %24 = vector.load %arg4[%c0_9, %c0_10] : memref<128x512xbf16, #tpu.memory_space<vmem>>, vector<128x512xbf16>
    %cst_11 = arith.constant dense<0.000000e+00> : vector<128x512xf32>
    %25 = tpu.matmul %23, %24, %cst_11 {dimension_numbers = #tpu.dot_dimension_numbers<[1], [0], [0], [1], [0, 0, 1, 1], [], []>} : vector<128x128xbf16>, vector<128x512xbf16>, vector<128x512xf32> -> vector<128x512xf32>
    %c0_12 = arith.constant 0 : index
    %c0_13 = arith.constant 0 : index
    %26 = vector.load %arg5[%c0_12, %c0_13] : memref<1x512xf32, #tpu.memory_space<vmem>>, vector<1x512xf32>
    %27 = vector.broadcast %26 : vector<1x512xf32> to vector<128x512xf32>
    %28 = arith.addf %25, %27 : vector<128x512xf32>
    %29 = arith.negf %28 : vector<128x512xf32>
    %30 = math.exp %29 : vector<128x512xf32>
    %cst_14 = arith.constant 1.000000e+00 : f32
    %31 = vector.broadcast %cst_14 : f32 to vector<128x512xf32>
    %32 = arith.addf %31, %30 : vector<128x512xf32>
    %33 = arith.divf %31, %32 : vector<128x512xf32>
    %34 = arith.mulf %28, %33 : vector<128x512xf32>
    %35 = arith.truncf %34 : vector<128x512xf32> to vector<128x512xbf16>
    %c0_15 = arith.constant 0 : index
    %c0_16 = arith.constant 0 : index
    %36 = vector.load %arg6[%c0_15, %c0_16] : memref<512x128xbf16, #tpu.memory_space<vmem>>, vector<512x128xbf16>
    %cst_17 = arith.constant dense<0.000000e+00> : vector<128x128xf32>
    %37 = tpu.matmul %35, %36, %cst_17 {dimension_numbers = #tpu.dot_dimension_numbers<[1], [0], [0], [1], [0, 0, 1, 1], [], []>} : vector<128x512xbf16>, vector<512x128xbf16>, vector<128x128xf32> -> vector<128x128xf32>
    %c0_18 = arith.constant 0 : index
    %c0_19 = arith.constant 0 : index
    %38 = vector.load %arg7[%c0_18, %c0_19] : memref<1x128xf32, #tpu.memory_space<vmem>>, vector<1x128xf32>
    %39 = vector.broadcast %38 : vector<1x128xf32> to vector<128x128xf32>
    %40 = arith.addf %37, %39 : vector<128x128xf32>
    %c0_20 = arith.constant 0 : index
    %c0_21 = arith.constant 0 : index
    %41 = vector.load %arg8[%c0_20, %c0_21] : memref<128x128xf32, #tpu.memory_space<vmem>>, vector<128x128xf32>
    tpu.vector_store %arg8[%c0_20, %c0_21], %40 {strides = array<i32>} : memref<128x128xf32, #tpu.memory_space<vmem>>, vector<128x128xf32>,
    return
  }
  func.func @transform_0(%arg0: i32) -> (i32, i32) {
    %c0_i32 = arith.constant 0 : i32
    %c0_i32_0 = arith.constant 0 : i32
    return %arg0, %c0_i32 : i32, i32
  }
  func.func @transform_1(%arg0: i32) -> (i32, i32) {
    %c0_i32 = arith.constant 0 : i32
    %c0_i32_0 = arith.constant 0 : i32
    %c0_i32_1 = arith.constant 0 : i32
    return %c0_i32, %c0_i32_0 : i32, i32
  }
  func.func @transform_2(%arg0: i32) -> (i32, i32) {
    %c0_i32 = arith.constant 0 : i32
    %c0_i32_0 = arith.constant 0 : i32
    %c0_i32_1 = arith.constant 0 : i32
    return %c0_i32, %c0_i32_0 : i32, i32
  }
  func.func @transform_3(%arg0: i32) -> (i32, i32) {
    %c0_i32 = arith.constant 0 : i32
    %c0_i32_0 = arith.constant 0 : i32
    %c0_i32_1 = arith.constant 0 : i32
    return %c0_i32, %c0_i32_0 : i32, i32
  }
  func.func @transform_4(%arg0: i32) -> (i32, i32) {
    %c0_i32 = arith.constant 0 : i32
    %c0_i32_0 = arith.constant 0 : i32
    %c0_i32_1 = arith.constant 0 : i32
    return %c0_i32, %c0_i32_0 : i32, i32
  }
  func.func @transform_5(%arg0: i32) -> (i32, i32) {
    %c0_i32 = arith.constant 0 : i32
    %c0_i32_0 = arith.constant 0 : i32
    %c0_i32_1 = arith.constant 0 : i32
    return %c0_i32, %c0_i32_0 : i32, i32
  }
  func.func @transform_6(%arg0: i32) -> (i32, i32) {
    %c0_i32 = arith.constant 0 : i32
    %c0_i32_0 = arith.constant 0 : i32
    %c0_i32_1 = arith.constant 0 : i32
    return %c0_i32, %c0_i32_0 : i32, i32
  }
  func.func @transform_7(%arg0: i32) -> (i32, i32) {
    %c0_i32 = arith.constant 0 : i32
    %c0_i32_0 = arith.constant 0 : i32
    return %arg0, %c0_i32 : i32, i32
  }
}

</mosaic_0001>

<llo_original>
// kernel: tpu_custom_call.1
$region0: #{tpu_custom_call.1}
  #allocation0 [shape = 'u32[]', space=smem, size = 0x4, offset = 0x4, fixed_abs, tag = 'smem constant byte address 0x4 - core index']
  #allocation1 [shape = 'u32[72,128]{1,0:T(1,128)}', space=vmem, size = 0x9000, scoped, tag = 'internal scratch']
  %s0 = inlined_call_operand.hbm [shape: f32[256,128], index: 0, kind: input, shape index: {}]
  %s1 = inlined_call_operand.hbm [shape: f32[1,128], index: 1, kind: input, shape index: {}]
  %s2 = inlined_call_operand.vmem [shape: f32[1,128], index: 2, kind: input, shape index: {}]
  %s3 = inlined_call_operand.hbm [shape: bf16[128,512], index: 3, kind: input, shape index: {}]
  %s4 = inlined_call_operand.hbm [shape: f32[1,512], index: 4, kind: input, shape index: {}]
  %s5 = inlined_call_operand.hbm [shape: bf16[512,128], index: 5, kind: input, shape index: {}]
  %s6 = inlined_call_operand.vmem [shape: f32[1,128], index: 6, kind: input, shape index: {}]
  %s7 = inlined_call_operand.hbm [shape: f32[256,128], index: 7, kind: output, shape index: {}]
  %s8 = sld [smem:[#allocation0]]
  $region81: #{tpu_custom_call.1} parent=0
    _
  %s10 = ssub.s32 1, %s8
  %s11 = scalar_select 0, %s10, %s8
  $region1: #{tpu_custom_call.1} parent=0
    #allocation2 [shape = 'u8[131072]{0}', space=vmem, size = 0x20000, scoped, tag = 'input window, operand 0']
    #allocation3 [shape = 's32[2]{0}', space=sflag, size = 0x8, scoped, tag = 'scoped memory for tpu_custom_call.1']
    #allocation4 [shape = 's32[2]{0}', space=sflag, size = 0x8, scoped, tag = 'scoped memory for tpu_custom_call.1']
    #allocation5 [shape = 'u8[512]{0}', space=vmem, size = 0x400, scoped, tag = 'input window, operand 1, single buffered']
    #allocation6 [shape = 's32[1]{0}', space=sflag, size = 0x4, scoped, tag = 'scoped memory for tpu_custom_call.1']
    #allocation7 [shape = 'u8[131072]{0}', space=vmem, size = 0x20000, scoped, tag = 'input window, operand 3, single buffered']
    #allocation8 [shape = 'u8[2048]{0}', space=vmem, size = 0x800, scoped, tag = 'input window, operand 4, single buffered']
    #allocation9 [shape = 's32[1]{0}', space=sflag, size = 0x4, scoped, tag = 'scoped memory for tpu_custom_call.1']
    #allocation10 [shape = 'u8[131072]{0}', space=vmem, size = 0x20000, scoped, tag = 'input window, operand 5, single buffered']
    #allocation11 [shape = 'u8[131072]{0}', space=vmem, size = 0x20000, scoped, tag = 'output window, operand 0']
    %12 = vsyncpa [#allocation3], 0
    %s13 = scalar_lea.sflag [#allocation3], 1
    %14 = vsyncpa %s13, 0
    %15 = vsyncpa [#allocation6], 0
    %16 = vsyncpa [#allocation9], 0
    %17 = vsyncpa [#allocation4], 0
    %s18 = scalar_lea.sflag [#allocation4], 1
    %19 = vsyncpa %s18, 0
    loop: start=0, step=1, limit=4
    $region2: #{tpu_custom_call.1} parent=1 // loop_pre_header
      _
    $region3: #{tpu_custom_call.1} parent=1 // loop_header
      %s21 = sphi 0, %s25
      %p22 = scmp.ge.s32.totalorder %s21, 4
      %s31 = sphi 0, %s33
      %s34 = sphi 0, %s31
      %s35 = sphi 0, %s34
      %s51 = sphi 0, %s35
      %s55 = sphi 0, %s55
      %s57 = sphi 0, %s55
      %s58 = sphi 0, %s57
      %s72 = sphi 0, %s58
      %s76 = sphi 0, %s76
      %s78 = sphi 0, %s76
      %s79 = sphi 0, %s78
      %s93 = sphi 0, %s79
      %s97 = sphi 0, %s97
      %s99 = sphi 0, %s97
      %s100 = sphi 0, %s99
      %s114 = sphi 0, %s100
      %s118 = sphi 0, %s118
      %s120 = sphi 0, %s118
      %s121 = sphi 0, %s120
      %s135 = sphi 0, %s121
      %s139 = sphi 0, %s139
      %s141 = sphi 0, %s139
      %s142 = sphi 0, %s141
      %s156 = sphi 0, %s142
      %s160 = sphi 0, %s160
      %s162 = sphi 0, %s160
      %s163 = sphi 0, %s162
      %s177 = sphi 0, %s163
      %s183 = sphi 0, %s185
      %s186 = sphi 0, %s183
      %s187 = sphi 0, %s186
      %s203 = sphi 0, %s187
    $region4: #{tpu_custom_call.1} parent=1 // loop_header_branch
      %24 = sbr.rel (%p22) target = $region8
    $region5: #{tpu_custom_call.1} parent=1 // loop_body
      %s26 = ssub.s32 %s21, 1
      %s27 = ssub.s32 %s21, 2
      %s28 = sadd.s32 %s21, 1
      %s29 = ssub.s32 %s21, %s28
      %p30 = scmp.eq.s32.totalorder %s29, 0
      %s32 = sadd.s32 %s31, 1
      %s33 = scalar_select %p30, %s31, %s32
      %p36 = pneg %p30
      %p37 = scmp.eq.s32.totalorder %s21, 1
      %p38 = por %p36, %p37
      %p39 = scmp.ne.s32.totalorder %s31, %s34
      %p40 = scmp.eq.s32.totalorder %s21, 0
      %p41 = por %p39, %p40
      %p42 = scmp.ne.s32.totalorder %s31, %s34
      %p43 = scmp.eq.s32.totalorder %s26, 1
      %p44 = por %p42, %p43
      %p45 = scmp.ne.s32.totalorder %s34, %s35
      %p46 = scmp.eq.s32.totalorder %s26, 0
      %p47 = por %p45, %p46
      %p48 = scmp.ne.s32.totalorder %s34, %s35
      %p49 = scmp.eq.s32.totalorder %s27, 1
      %p50 = por %p48, %p49
      %p52 = scmp.ne.s32.totalorder %s35, %s51
      %p53 = scmp.eq.s32.totalorder %s27, 0
      %p54 = por %p52, %p53
      %s56 = sadd.s32 %s55, 1
      %p59 = scmp.eq.s32.totalorder %s21, 1
      %p60 = scmp.ne.s32.totalorder %s55, %s57
      %p61 = scmp.eq.s32.totalorder %s21, 0
      %p62 = por %p60, %p61
      %p63 = scmp.ne.s32.totalorder %s55, %s57
      %p64 = scmp.eq.s32.totalorder %s26, 1
      %p65 = por %p63, %p64
      %p66 = scmp.ne.s32.totalorder %s57, %s58
      %p67 = scmp.eq.s32.totalorder %s26, 0
      %p68 = por %p66, %p67
      %p69 = scmp.ne.s32.totalorder %s57, %s58
      %p70 = scmp.eq.s32.totalorder %s27, 1
      %p71 = por %p69, %p70
      %p73 = scmp.ne.s32.totalorder %s58, %s72
      %p74 = scmp.eq.s32.totalorder %s27, 0
      %p75 = por %p73, %p74
      %s77 = sadd.s32 %s76, 1
      %p80 = scmp.eq.s32.totalorder %s21, 1
      %p81 = scmp.ne.s32.totalorder %s76, %s78
      %p82 = scmp.eq.s32.totalorder %s21, 0
      %p83 = por %p81, %p82
      %p84 = scmp.ne.s32.totalorder %s76, %s78
      %p85 = scmp.eq.s32.totalorder %s26, 1
      %p86 = por %p84, %p85
      %p87 = scmp.ne.s32.totalorder %s78, %s79
      %p88 = scmp.eq.s32.totalorder %s26, 0
      %p89 = por %p87, %p88
      %p90 = scmp.ne.s32.totalorder %s78, %s79
      %p91 = scmp.eq.s32.totalorder %s27, 1
      %p92 = por %p90, %p91
      %p94 = scmp.ne.s32.totalorder %s79, %s93
      %p95 = scmp.eq.s32.totalorder %s27, 0
      %p96 = por %p94, %p95
      %s98 = sadd.s32 %s97, 1
      %p101 = scmp.eq.s32.totalorder %s21, 1
      %p102 = scmp.ne.s32.totalorder %s97, %s99
      %p103 = scmp.eq.s32.totalorder %s21, 0
      %p104 = por %p102, %p103
      %p105 = scmp.ne.s32.totalorder %s97, %s99
      %p106 = scmp.eq.s32.totalorder %s26, 1
      %p107 = por %p105, %p106
      %p108 = scmp.ne.s32.totalorder %s99, %s100
      %p109 = scmp.eq.s32.totalorder %s26, 0
      %p110 = por %p108, %p109
      %p111 = scmp.ne.s32.totalorder %s99, %s100
      %p112 = scmp.eq.s32.totalorder %s27, 1
      %p113 = por %p111, %p112
      %p115 = scmp.ne.s32.totalorder %s100, %s114
      %p116 = scmp.eq.s32.totalorder %s27, 0
      %p117 = por %p115, %p116
      %s119 = sadd.s32 %s118, 1
      %p122 = scmp.eq.s32.totalorder %s21, 1
      %p123 = scmp.ne.s32.totalorder %s118, %s120
      %p124 = scmp.eq.s32.totalorder %s21, 0
      %p125 = por %p123, %p124
      %p126 = scmp.ne.s32.totalorder %s118, %s120
      %p127 = scmp.eq.s32.totalorder %s26, 1
      %p128 = por %p126, %p127
      %p129 = scmp.ne.s32.totalorder %s120, %s121
      %p130 = scmp.eq.s32.totalorder %s26, 0
      %p131 = por %p129, %p130
      %p132 = scmp.ne.s32.totalorder %s120, %s121
      %p133 = scmp.eq.s32.totalorder %s27, 1
      %p134 = por %p132, %p133
      %p136 = scmp.ne.s32.totalorder %s121, %s135
      %p137 = scmp.eq.s32.totalorder %s27, 0
      %p138 = por %p136, %p137
      %s140 = sadd.s32 %s139, 1
      %p143 = scmp.eq.s32.totalorder %s21, 1
      %p144 = scmp.ne.s32.totalorder %s139, %s141
      %p145 = scmp.eq.s32.totalorder %s21, 0
      %p146 = por %p144, %p145
      %p147 = scmp.ne.s32.totalorder %s139, %s141
      %p148 = scmp.eq.s32.totalorder %s26, 1
      %p149 = por %p147, %p148
      %p150 = scmp.ne.s32.totalorder %s141, %s142
      %p151 = scmp.eq.s32.totalorder %s26, 0
      %p152 = por %p150, %p151
      %p153 = scmp.ne.s32.totalorder %s141, %s142
      %p154 = scmp.eq.s32.totalorder %s27, 1
      %p155 = por %p153, %p154
      %p157 = scmp.ne.s32.totalorder %s142, %s156
      %p158 = scmp.eq.s32.totalorder %s27, 0
      %p159 = por %p157, %p158
      %s161 = sadd.s32 %s160, 1
      %p164 = scmp.eq.s32.totalorder %s21, 1
      %p165 = scmp.ne.s32.totalorder %s160, %s162
      %p166 = scmp.eq.s32.totalorder %s21, 0
      %p167 = por %p165, %p166
      %p168 = scmp.ne.s32.totalorder %s160, %s162
      %p169 = scmp.eq.s32.totalorder %s26, 1
      %p170 = por %p168, %p169
      %p171 = scmp.ne.s32.totalorder %s162, %s163
      %p172 = scmp.eq.s32.totalorder %s26, 0
      %p173 = por %p171, %p172
      %p174 = scmp.ne.s32.totalorder %s162, %s163
      %p175 = scmp.eq.s32.totalorder %s27, 1
      %p176 = por %p174, %p175
      %p178 = scmp.ne.s32.totalorder %s163, %s177
      %p179 = scmp.eq.s32.totalorder %s27, 0
      %p180 = por %p178, %p179
      %s181 = ssub.s32 %s21, %s28
      %p182 = scmp.eq.s32.totalorder %s181, 0
      %s184 = sadd.s32 %s183, 1
      %s185 = scalar_select %p182, %s183, %s184
      %p188 = pneg %p182
      %p189 = scmp.eq.s32.totalorder %s21, 1
      %p190 = por %p188, %p189
      %p191 = scmp.ne.s32.totalorder %s183, %s186
      %p192 = scmp.eq.s32.totalorder %s21, 0
      %p193 = por %p191, %p192
      %p194 = scmp.ne.s32.totalorder %s183, %s186
      %p195 = scmp.eq.s32.totalorder %s26, 1
      %p196 = por %p194, %p195
      %p197 = scmp.ne.s32.totalorder %s186, %s187
      %p198 = scmp.eq.s32.totalorder %s26, 0
      %p199 = por %p197, %p198
      %p200 = scmp.ne.s32.totalorder %s186, %s187
      %p201 = scmp.eq.s32.totalorder %s27, 1
      %p202 = por %p200, %p201
      %p204 = scmp.ne.s32.totalorder %s187, %s203
      %p205 = scmp.eq.s32.totalorder %s27, 0
      %p206 = por %p204, %p205
      %p207 = scmp.le.s32.totalorder 1, %s21
      %p208 = scmp.lt.s32.totalorder %s21, 3
      %p209 = pnand %p207, %p208
      %p210 = pneg %p209
      // Predicated region
      $region9: #{tpu_custom_call.1} parent=5 // pred_check
        _
      $region10: #{tpu_custom_call.1} parent=5 // pred_check_branch
        %212 = sbr.rel (%p209) target = $region12
      $region11: #{tpu_custom_call.1} parent=5 // pred_region
        %s213 = ssub.s32 %s21, 1
        // Predicated region
        $region13: #{tpu_custom_call.1} parent=11 // pred_check
          %p214 = pneg %p68
        $region14: #{tpu_custom_call.1} parent=11 // pred_check_branch
          %216 = sbr.rel (%p214) target = $region16
        $region15: #{tpu_custom_call.1} parent=11 // pred_region
          %218 = vsyncadd [#allocation6], 0
          %s220 = sshll.u32 %s1, 4
          %s221 = int_to_ptr.hbm [resolvable:$true] %s220
          %s222 = sshll.u32 [#allocation5], 4
          %s223 = int_to_ptr.vmem [resolvable:$true] %s222
          %225 = dma.hbm_to_vmem [thread:$0]  %s221, 16, %s223, [#allocation6]
        $region16: #{tpu_custom_call.1} parent=11 // pred_fallthru
          _
        // Predicated region
        $region17: #{tpu_custom_call.1} parent=11 // pred_check
          %p226 = pneg %p89
        $region18: #{tpu_custom_call.1} parent=11 // pred_check_branch
          %228 = sbr.rel (%p226) target = $region20
        $region19: #{tpu_custom_call.1} parent=11 // pred_region
          _
        $region20: #{tpu_custom_call.1} parent=11 // pred_fallthru
          _
        // Predicated region
        $region21: #{tpu_custom_call.1} parent=11 // pred_check
          %p229 = pneg %p110
        $region22: #{tpu_custom_call.1} parent=11 // pred_check_branch
          %231 = sbr.rel (%p229) target = $region24
        $region23: #{tpu_custom_call.1} parent=11 // pred_region
          %233 = vsyncadd [#allocation6], 0
          %s234 = sshll.u32 %s3, 4
          %s235 = int_to_ptr.hbm [resolvable:$true] %s234
          %s236 = sshll.u32 [#allocation7], 4
          %s237 = int_to_ptr.vmem [resolvable:$true] %s236
          %242 = dma.hbm_to_vmem [thread:$0]  %s235, 4096, %s237, [#allocation6], 256, 256, 16
        $region24: #{tpu_custom_call.1} parent=11 // pred_fallthru
          _
        // Predicated region
        $region25: #{tpu_custom_call.1} parent=11 // pred_check
          %p243 = pneg %p131
        $region26: #{tpu_custom_call.1} parent=11 // pred_check_branch
          %245 = sbr.rel (%p243) target = $region28
        $region27: #{tpu_custom_call.1} parent=11 // pred_region
          %247 = vsyncadd [#allocation9], 0
          %s249 = sshll.u32 %s4, 4
          %s250 = int_to_ptr.hbm [resolvable:$true] %s249
          %s251 = sshll.u32 [#allocation8], 4
          %s252 = int_to_ptr.vmem [resolvable:$true] %s251
          %254 = dma.hbm_to_vmem [thread:$0]  %s250, 64, %s252, [#allocation9]
        $region28: #{tpu_custom_call.1} parent=11 // pred_fallthru
          _
        // Predicated region
        $region29: #{tpu_custom_call.1} parent=11 // pred_check
          %p255 = pneg %p152
        $region30: #{tpu_custom_call.1} parent=11 // pred_check_branch
          %257 = sbr.rel (%p255) target = $region32
        $region31: #{tpu_custom_call.1} parent=11 // pred_region
          %259 = vsyncadd [#allocation9], 0
          %s260 = sshll.u32 %s5, 4
          %s261 = int_to_ptr.hbm [resolvable:$true] %s260
          %s262 = sshll.u32 [#allocation10], 4
          %s263 = int_to_ptr.vmem [resolvable:$true] %s262
          %268 = dma.hbm_to_vmem [thread:$0]  %s261, 4096, %s263, [#allocation9], 64, 64, 4
        $region32: #{tpu_custom_call.1} parent=11 // pred_fallthru
          _
        // Predicated region
        $region33: #{tpu_custom_call.1} parent=11 // pred_check
          %p269 = pneg %p173
        $region34: #{tpu_custom_call.1} parent=11 // pred_check_branch
          %271 = sbr.rel (%p269) target = $region36
        $region35: #{tpu_custom_call.1} parent=11 // pred_region
          _
        $region36: #{tpu_custom_call.1} parent=11 // pred_fallthru
          _
      $region12: #{tpu_custom_call.1} parent=5 // pred_fallthru
        _
      %p272 = scmp.lt.s32.totalorder %s21, 2
      // Predicated region
      $region37: #{tpu_custom_call.1} parent=5 // pred_check
        %p273 = pneg %p272
      $region38: #{tpu_custom_call.1} parent=5 // pred_check_branch
        %275 = sbr.rel (%p273) target = $region40
      $region39: #{tpu_custom_call.1} parent=5 // pred_region
        // Predicated region
        $region41: #{tpu_custom_call.1} parent=39 // pred_check
          %p276 = pneg %p41
        $region42: #{tpu_custom_call.1} parent=39 // pred_check_branch
          %278 = sbr.rel (%p276) target = $region44
        $region43: #{tpu_custom_call.1} parent=39 // pred_region
          %s279 = sand.u32 %s31, 1
          %s280 = scalar_lea.sflag [#allocation3], %s279
          %s281 = sand.u32 %s31, 1
          %s282 = smul.addr %s281, 128
          %s283 = scalar_lea.vmem [#allocation2], %s282
          %s284 = smul.u32 16, %s21
          %286 = vsyncadd %s280, 0
          %s287 = smul.addr %s284, 8
          %s288 = scalar_lea.hbm %s0, %s287
          %s289 = sshll.u32 %s288, 4
          %s290 = int_to_ptr.hbm [resolvable:$true] %s289
          %s291 = sshll.u32 %s283, 4
          %s292 = int_to_ptr.vmem [resolvable:$true] %s291
          %297 = dma.hbm_to_vmem [thread:$0]  %s290, 2048, %s292, %s280, 128, 128, 8
        $region44: #{tpu_custom_call.1} parent=39 // pred_fallthru
          _
      $region40: #{tpu_custom_call.1} parent=5 // pred_fallthru
        _
      %p298 = scmp.le.s32.totalorder 1, %s21
      %p299 = scmp.lt.s32.totalorder %s21, 3
      %p300 = pnand %p298, %p299
      %p301 = pneg %p300
      // Predicated region
      $region45: #{tpu_custom_call.1} parent=5 // pred_check
        _
      $region46: #{tpu_custom_call.1} parent=5 // pred_check_branch
        %303 = sbr.rel (%p300) target = $region48
      $region47: #{tpu_custom_call.1} parent=5 // pred_region
        %s304 = ssub.s32 %s21, 1
        %s305 = sand.u32 %s34, 1
        %s306 = scalar_lea.sflag [#allocation3], %s305
        %s307 = sand.u32 %s34, 1
        %s308 = smul.addr %s307, 128
        %s309 = scalar_lea.vmem [#allocation2], %s308
        // Predicated region
        $region49: #{tpu_custom_call.1} parent=47 // pred_check
          %p310 = pneg %p47
        $region50: #{tpu_custom_call.1} parent=47 // pred_check_branch
          %312 = sbr.rel (%p310) target = $region52
        $region51: #{tpu_custom_call.1} parent=47 // pred_region
          %314 = dma.done %s306, 2048
        $region52: #{tpu_custom_call.1} parent=47 // pred_fallthru
          _
        // Predicated region
        $region53: #{tpu_custom_call.1} parent=47 // pred_check
          %p315 = pneg %p68
        $region54: #{tpu_custom_call.1} parent=47 // pred_check_branch
          %317 = sbr.rel (%p315) target = $region56
        $region55: #{tpu_custom_call.1} parent=47 // pred_region
          %319 = dma.done [#allocation6], 16
        $region56: #{tpu_custom_call.1} parent=47 // pred_fallthru
          _
        // Predicated region
        $region57: #{tpu_custom_call.1} parent=47 // pred_check
          %p320 = pneg %p110
        $region58: #{tpu_custom_call.1} parent=47 // pred_check_branch
          %322 = sbr.rel (%p320) target = $region60
        $region59: #{tpu_custom_call.1} parent=47 // pred_region
          %324 = dma.done [#allocation6], 4096
        $region60: #{tpu_custom_call.1} parent=47 // pred_fallthru
          _
        // Predicated region
        $region61: #{tpu_custom_call.1} parent=47 // pred_check
          %p325 = pneg %p131
        $region62: #{tpu_custom_call.1} parent=47 // pred_check_branch
          %327 = sbr.rel (%p325) target = $region64
        $region63: #{tpu_custom_call.1} parent=47 // pred_region
          %329 = dma.done [#allocation9], 64
        $region64: #{tpu_custom_call.1} parent=47 // pred_fallthru
          _
        // Predicated region
        $region65: #{tpu_custom_call.1} parent=47 // pred_check
          %p330 = pneg %p152
        $region66: #{tpu_custom_call.1} parent=47 // pred_check_branch
          %332 = sbr.rel (%p330) target = $region68
        $region67: #{tpu_custom_call.1} parent=47 // pred_region
          %334 = dma.done [#allocation9], 4096
        $region68: #{tpu_custom_call.1} parent=47 // pred_fallthru
          _
        %s335 = sand.u32 %s34, 1
        %s336 = scalar_lea.sflag [#allocation3], %s335
        %s337 = sand.u32 %s34, 1
        %s338 = smul.addr %s337, 128
        %s339 = scalar_lea.vmem [#allocation2], %s338
        %p340 = pneg %p47
        %p341 = pneg %p44
        %p342 = pneg %p68
        %p343 = pneg %p65
        %p344 = pneg %p89
        %p345 = pneg %p86
        %p346 = pneg %p110
        %p347 = pneg %p107
        %p348 = pneg %p131
        %p349 = pneg %p128
        %p350 = pneg %p152
        %p351 = pneg %p149
        %p352 = pneg %p173
        %p353 = pneg %p170
        %p354 = pneg %p199
        %p355 = pneg %p196
        %s356 = sand.u32 %s186, 1
        %s357 = scalar_lea.sflag [#allocation4], %s356
        %s358 = sand.u32 %s186, 1
        %s359 = smul.addr %s358, 128
        %s360 = scalar_lea.vmem [#allocation11], %s359
        %s361 = smul.u32 16, %s26
        %s362 = smul.u32 16, %s26
        %v363 = vld [vmem:[%s309] sm:$0xff]
        %v364 = vld [vmem:[%s309 + $0x8] sm:$0xff]
        %v365 = vld [vmem:[%s309 + $0x10] sm:$0xff]
        %v366 = vld [vmem:[%s309 + $0x18] sm:$0xff]
        %v367 = vld [vmem:[%s309 + $0x20] sm:$0xff]
        %v368 = vld [vmem:[%s309 + $0x28] sm:$0xff]
        %v369 = vld [vmem:[%s309 + $0x30] sm:$0xff]
        %v370 = vld [vmem:[%s309 + $0x38] sm:$0xff]
        %v371 = vld [vmem:[%s309 + $0x40] sm:$0xff]
        %v372 = vld [vmem:[%s309 + $0x48] sm:$0xff]
        %v373 = vld [vmem:[%s309 + $0x50] sm:$0xff]
        %v374 = vld [vmem:[%s309 + $0x58] sm:$0xff]
        %v375 = vld [vmem:[%s309 + $0x60] sm:$0xff]
        %v376 = vld [vmem:[%s309 + $0x68] sm:$0xff]
        %v377 = vld [vmem:[%s309 + $0x70] sm:$0xff]
        %v378 = vld [vmem:[%s309 + $0x78] sm:$0xff]
        %379 = vadd.xlane.f32.xlu0 %v363
        %v380 = vpop.xlane.xlu0 %379
        %381 = vadd.xlane.f32.xlu0 %v364
        %v382 = vpop.xlane.xlu0 %381
        %383 = vadd.xlane.f32.xlu0 %v365
        %v384 = vpop.xlane.xlu0 %383
        %385 = vadd.xlane.f32.xlu0 %v366
        %v386 = vpop.xlane.xlu0 %385
        %387 = vadd.xlane.f32.xlu0 %v367
        %v388 = vpop.xlane.xlu0 %387
        %389 = vadd.xlane.f32.xlu0 %v368
        %v390 = vpop.xlane.xlu0 %389
        %391 = vadd.xlane.f32.xlu0 %v369
        %v392 = vpop.xlane.xlu0 %391
        %393 = vadd.xlane.f32.xlu0 %v370
        %v394 = vpop.xlane.xlu0 %393
        %395 = vadd.xlane.f32.xlu0 %v371
        %v396 = vpop.xlane.xlu0 %395
        %397 = vadd.xlane.f32.xlu0 %v372
        %v398 = vpop.xlane.xlu0 %397
        %399 = vadd.xlane.f32.xlu0 %v373
        %v400 = vpop.xlane.xlu0 %399
        %401 = vadd.xlane.f32.xlu0 %v374
        %v402 = vpop.xlane.xlu0 %401
        %403 = vadd.xlane.f32.xlu0 %v375
        %v404 = vpop.xlane.xlu0 %403
        %405 = vadd.xlane.f32.xlu0 %v376
        %v406 = vpop.xlane.xlu0 %405
        %407 = vadd.xlane.f32.xlu0 %v377
        %v408 = vpop.xlane.xlu0 %407
        %409 = vadd.xlane.f32.xlu0 %v378
        %v410 = vpop.xlane.xlu0 %409
        %v411 = vrcp.pop 128.0
        %v412 = vmul.f32 128.0, %v411
        %v413 = vsub.f32 1.0, %v412
        %v414 = vmul.f32 %v411, %v413
        %v415 = vadd.f32 %v411, %v414
        %vm416 = vweird.f32 %v411
        %v417 = vsel %vm416, %v411, %v415
        %v418 = vmul.f32 %v380, %v417
        %v419 = vmul.f32 %v382, %v417
        %v420 = vmul.f32 %v384, %v417
        %v421 = vmul.f32 %v386, %v417
        %v422 = vmul.f32 %v388, %v417
        %v423 = vmul.f32 %v390, %v417
        %v424 = vmul.f32 %v392, %v417
        %v425 = vmul.f32 %v394, %v417
        %v426 = vmul.f32 %v396, %v417
        %v427 = vmul.f32 %v398, %v417
        %v428 = vmul.f32 %v400, %v417
        %v429 = vmul.f32 %v402, %v417
        %v430 = vmul.f32 %v404, %v417
        %v431 = vmul.f32 %v406, %v417
        %v432 = vmul.f32 %v408, %v417
        %v433 = vmul.f32 %v410, %v417
        %v434 = vsub.f32 %v363, %v418
        %v435 = vsub.f32 %v364, %v419
        %v436 = vsub.f32 %v365, %v420
        %v437 = vsub.f32 %v366, %v421
        %v438 = vsub.f32 %v367, %v422
        %v439 = vsub.f32 %v368, %v423
        %v440 = vsub.f32 %v369, %v424
        %v441 = vsub.f32 %v370, %v425
        %v442 = vsub.f32 %v371, %v426
        %v443 = vsub.f32 %v372, %v427
        %v444 = vsub.f32 %v373, %v428
        %v445 = vsub.f32 %v374, %v429
        %v446 = vsub.f32 %v375, %v430
        %v447 = vsub.f32 %v376, %v431
        %v448 = vsub.f32 %v377, %v432
        %v449 = vsub.f32 %v378, %v433
        %v450 = vmul.f32 %v434, %v434
        %v451 = vmul.f32 %v435, %v435
        %v452 = vmul.f32 %v436, %v436
        %v453 = vmul.f32 %v437, %v437
        %v454 = vmul.f32 %v438, %v438
        %v455 = vmul.f32 %v439, %v439
        %v456 = vmul.f32 %v440, %v440
        %v457 = vmul.f32 %v441, %v441
        %v458 = vmul.f32 %v442, %v442
        %v459 = vmul.f32 %v443, %v443
        %v460 = vmul.f32 %v444, %v444
        %v461 = vmul.f32 %v445, %v445
        %v462 = vmul.f32 %v446, %v446
        %v463 = vmul.f32 %v447, %v447
        %v464 = vmul.f32 %v448, %v448
        %v465 = vmul.f32 %v449, %v449
        %466 = vadd.xlane.f32.xlu0 %v450
        %v467 = vpop.xlane.xlu0 %466
        %468 = vadd.xlane.f32.xlu0 %v451
        %v469 = vpop.xlane.xlu0 %468
        %470 = vadd.xlane.f32.xlu0 %v452
        %v471 = vpop.xlane.xlu0 %470
        %472 = vadd.xlane.f32.xlu0 %v453
        %v473 = vpop.xlane.xlu0 %472
        %474 = vadd.xlane.f32.xlu0 %v454
        %v475 = vpop.xlane.xlu0 %474
        %476 = vadd.xlane.f32.xlu0 %v455
        %v477 = vpop.xlane.xlu0 %476
        %478 = vadd.xlane.f32.xlu0 %v456
        %v479 = vpop.xlane.xlu0 %478
        %480 = vadd.xlane.f32.xlu0 %v457
        %v481 = vpop.xlane.xlu0 %480
        %482 = vadd.xlane.f32.xlu0 %v458
        %v483 = vpop.xlane.xlu0 %482
        %484 = vadd.xlane.f32.xlu0 %v459
        %v485 = vpop.xlane.xlu0 %484
        %486 = vadd.xlane.f32.xlu0 %v460
        %v487 = vpop.xlane.xlu0 %486
        %488 = vadd.xlane.f32.xlu0 %v461
        %v489 = vpop.xlane.xlu0 %488
        %490 = vadd.xlane.f32.xlu0 %v462
        %v491 = vpop.xlane.xlu0 %490
        %492 = vadd.xlane.f32.xlu0 %v463
        %v493 = vpop.xlane.xlu0 %492
        %494 = vadd.xlane.f32.xlu0 %v464
        %v495 = vpop.xlane.xlu0 %494
        %496 = vadd.xlane.f32.xlu0 %v465
        %v497 = vpop.xlane.xlu0 %496
        %v498 = vmul.f32 %v467, %v417
        %v499 = vmul.f32 %v469, %v417
        %v500 = vmul.f32 %v471, %v417
        %v501 = vmul.f32 %v473, %v417
        %v502 = vmul.f32 %v475, %v417
        %v503 = vmul.f32 %v477, %v417
        %v504 = vmul.f32 %v479, %v417
        %v505 = vmul.f32 %v481, %v417
        %v506 = vmul.f32 %v483, %v417
        %v507 = vmul.f32 %v485, %v417
        %v508 = vmul.f32 %v487, %v417
        %v509 = vmul.f32 %v489, %v417
        %v510 = vmul.f32 %v491, %v417
        %v511 = vmul.f32 %v493, %v417
        %v512 = vmul.f32 %v495, %v417
        %v513 = vmul.f32 %v497, %v417
        %v514 = vadd.f32 %v498, 1e-05
        %v515 = vadd.f32 %v499, 1e-05
        %v516 = vadd.f32 %v500, 1e-05
        %v517 = vadd.f32 %v501, 1e-05
        %v518 = vadd.f32 %v502, 1e-05
        %v519 = vadd.f32 %v503, 1e-05
        %v520 = vadd.f32 %v504, 1e-05
        %v521 = vadd.f32 %v505, 1e-05
        %v522 = vadd.f32 %v506, 1e-05
        %v523 = vadd.f32 %v507, 1e-05
        %v524 = vadd.f32 %v508, 1e-05
        %v525 = vadd.f32 %v509, 1e-05
        %v526 = vadd.f32 %v510, 1e-05
        %v527 = vadd.f32 %v511, 1e-05
        %v528 = vadd.f32 %v512, 1e-05
        %v529 = vadd.f32 %v513, 1e-05
        %v530 = vrsqrt.pop %v514
        %v531 = vmul.f32 %v530, %v514
        %v532 = vmul.f32 %v531, %v530
        %v533 = vmul.f32 0.5, %v532
        %v534 = vsub.f32 1.5, %v533
        %v535 = vmul.f32 %v530, %v534
        %vm536 = vweird.f32 %v514
        %vm537 = vweird.f32 %v530
        %vm538 = vmor %vm536, %vm537
        %v539 = vsel %vm538, %v530, %v535
        %v540 = vrsqrt.pop %v515
        %v541 = vmul.f32 %v540, %v515
        %v542 = vmul.f32 %v541, %v540
        %v543 = vmul.f32 0.5, %v542
        %v544 = vsub.f32 1.5, %v543
        %v545 = vmul.f32 %v540, %v544
        %vm546 = vweird.f32 %v515
        %vm547 = vweird.f32 %v540
        %vm548 = vmor %vm546, %vm547
        %v549 = vsel %vm548, %v540, %v545
        %v550 = vrsqrt.pop %v516
        %v551 = vmul.f32 %v550, %v516
        %v552 = vmul.f32 %v551, %v550
        %v553 = vmul.f32 0.5, %v552
        %v554 = vsub.f32 1.5, %v553
        %v555 = vmul.f32 %v550, %v554
        %vm556 = vweird.f32 %v516
        %vm557 = vweird.f32 %v550
        %vm558 = vmor %vm556, %vm557
        %v559 = vsel %vm558, %v550, %v555
        %v560 = vrsqrt.pop %v517
        %v561 = vmul.f32 %v560, %v517
        %v562 = vmul.f32 %v561, %v560
        %v563 = vmul.f32 0.5, %v562
        %v564 = vsub.f32 1.5, %v563
        %v565 = vmul.f32 %v560, %v564
        %vm566 = vweird.f32 %v517
        %vm567 = vweird.f32 %v560
        %vm568 = vmor %vm566, %vm567
        %v569 = vsel %vm568, %v560, %v565
        %v570 = vrsqrt.pop %v518
        %v571 = vmul.f32 %v570, %v518
        %v572 = vmul.f32 %v571, %v570
        %v573 = vmul.f32 0.5, %v572
        %v574 = vsub.f32 1.5, %v573
        %v575 = vmul.f32 %v570, %v574
        %vm576 = vweird.f32 %v518
        %vm577 = vweird.f32 %v570
        %vm578 = vmor %vm576, %vm577
        %v579 = vsel %vm578, %v570, %v575
        %v580 = vrsqrt.pop %v519
        %v581 = vmul.f32 %v580, %v519
        %v582 = vmul.f32 %v581, %v580
        %v583 = vmul.f32 0.5, %v582
        %v584 = vsub.f32 1.5, %v583
        %v585 = vmul.f32 %v580, %v584
        %vm586 = vweird.f32 %v519
        %vm587 = vweird.f32 %v580
        %vm588 = vmor %vm586, %vm587
        %v589 = vsel %vm588, %v580, %v585
        %v590 = vrsqrt.pop %v520
        %v591 = vmul.f32 %v590, %v520
        %v592 = vmul.f32 %v591, %v590
        %v593 = vmul.f32 0.5, %v592
        %v594 = vsub.f32 1.5, %v593
        %v595 = vmul.f32 %v590, %v594
        %vm596 = vweird.f32 %v520
        %vm597 = vweird.f32 %v590
        %vm598 = vmor %vm596, %vm597
        %v599 = vsel %vm598, %v590, %v595
        %v600 = vrsqrt.pop %v521
        %v601 = vmul.f32 %v600, %v521
        %v602 = vmul.f32 %v601, %v600
        %v603 = vmul.f32 0.5, %v602
        %v604 = vsub.f32 1.5, %v603
        %v605 = vmul.f32 %v600, %v604
        %vm606 = vweird.f32 %v521
        %vm607 = vweird.f32 %v600
        %vm608 = vmor %vm606, %vm607
        %v609 = vsel %vm608, %v600, %v605
        %v610 = vrsqrt.pop %v522
        %v611 = vmul.f32 %v610, %v522
        %v612 = vmul.f32 %v611, %v610
        %v613 = vmul.f32 0.5, %v612
        %v614 = vsub.f32 1.5, %v613
        %v615 = vmul.f32 %v610, %v614
        %vm616 = vweird.f32 %v522
        %vm617 = vweird.f32 %v610
        %vm618 = vmor %vm616, %vm617
        %v619 = vsel %vm618, %v610, %v615
        %v620 = vrsqrt.pop %v523
        %v621 = vmul.f32 %v620, %v523
        %v622 = vmul.f32 %v621, %v620
        %v623 = vmul.f32 0.5, %v622
        %v624 = vsub.f32 1.5, %v623
        %v625 = vmul.f32 %v620, %v624
        %vm626 = vweird.f32 %v523
        %vm627 = vweird.f32 %v620
        %vm628 = vmor %vm626, %vm627
        %v629 = vsel %vm628, %v620, %v625
        %v630 = vrsqrt.pop %v524
        %v631 = vmul.f32 %v630, %v524
        %v632 = vmul.f32 %v631, %v630
        %v633 = vmul.f32 0.5, %v632
        %v634 = vsub.f32 1.5, %v633
        %v635 = vmul.f32 %v630, %v634
        %vm636 = vweird.f32 %v524
        %vm637 = vweird.f32 %v630
        %vm638 = vmor %vm636, %vm637
        %v639 = vsel %vm638, %v630, %v635
        %v640 = vrsqrt.pop %v525
        %v641 = vmul.f32 %v640, %v525
        %v642 = vmul.f32 %v641, %v640
        %v643 = vmul.f32 0.5, %v642
        %v644 = vsub.f32 1.5, %v643
        %v645 = vmul.f32 %v640, %v644
        %vm646 = vweird.f32 %v525
        %vm647 = vweird.f32 %v640
        %vm648 = vmor %vm646, %vm647
        %v649 = vsel %vm648, %v640, %v645
        %v650 = vrsqrt.pop %v526
        %v651 = vmul.f32 %v650, %v526
        %v652 = vmul.f32 %v651, %v650
        %v653 = vmul.f32 0.5, %v652
        %v654 = vsub.f32 1.5, %v653
        %v655 = vmul.f32 %v650, %v654
        %vm656 = vweird.f32 %v526
        %vm657 = vweird.f32 %v650
        %vm658 = vmor %vm656, %vm657
        %v659 = vsel %vm658, %v650, %v655
        %v660 = vrsqrt.pop %v527
        %v661 = vmul.f32 %v660, %v527
        %v662 = vmul.f32 %v661, %v660
        %v663 = vmul.f32 0.5, %v662
        %v664 = vsub.f32 1.5, %v663
        %v665 = vmul.f32 %v660, %v664
        %vm666 = vweird.f32 %v527
        %vm667 = vweird.f32 %v660
        %vm668 = vmor %vm666, %vm667
        %v669 = vsel %vm668, %v660, %v665
        %v670 = vrsqrt.pop %v528
        %v671 = vmul.f32 %v670, %v528
        %v672 = vmul.f32 %v671, %v670
        %v673 = vmul.f32 0.5, %v672
        %v674 = vsub.f32 1.5, %v673
        %v675 = vmul.f32 %v670, %v674
        %vm676 = vweird.f32 %v528
        %vm677 = vweird.f32 %v670
        %vm678 = vmor %vm676, %vm677
        %v679 = vsel %vm678, %v670, %v675
        %v680 = vrsqrt.pop %v529
        %v681 = vmul.f32 %v680, %v529
        %v682 = vmul.f32 %v681, %v680
        %v683 = vmul.f32 0.5, %v682
        %v684 = vsub.f32 1.5, %v683
        %v685 = vmul.f32 %v680, %v684
        %vm686 = vweird.f32 %v529
        %vm687 = vweird.f32 %v680
        %vm688 = vmor %vm686, %vm687
        %v689 = vsel %vm688, %v680, %v685
        %v690 = vmul.f32 %v434, %v539
        %v691 = vmul.f32 %v435, %v549
        %v692 = vmul.f32 %v436, %v559
        %v693 = vmul.f32 %v437, %v569
        %v694 = vmul.f32 %v438, %v579
        %v695 = vmul.f32 %v439, %v589
        %v696 = vmul.f32 %v440, %v599
        %v697 = vmul.f32 %v441, %v609
        %v698 = vmul.f32 %v442, %v619
        %v699 = vmul.f32 %v443, %v629
        %v700 = vmul.f32 %v444, %v639
        %v701 = vmul.f32 %v445, %v649
        %v702 = vmul.f32 %v446, %v659
        %v703 = vmul.f32 %v447, %v669
        %v704 = vmul.f32 %v448, %v679
        %v705 = vmul.f32 %v449, %v689
        %v706 = vld [vmem:[#allocation5] sm:$0x1]
        %v708 = vperm.slane %v706, 0
        %v710 = vmul.f32 %v690, %v708
        %v711 = vmul.f32 %v691, %v708
        %v712 = vmul.f32 %v692, %v708
        %v713 = vmul.f32 %v693, %v708
        %v714 = vmul.f32 %v694, %v708
        %v715 = vmul.f32 %v695, %v708
        %v716 = vmul.f32 %v696, %v708
        %v717 = vmul.f32 %v697, %v708
        %v718 = vmul.f32 %v698, %v708
        %v719 = vmul.f32 %v699, %v708
        %v720 = vmul.f32 %v700, %v708
        %v721 = vmul.f32 %v701, %v708
        %v722 = vmul.f32 %v702, %v708
        %v723 = vmul.f32 %v703, %v708
        %v724 = vmul.f32 %v704, %v708
        %v725 = vmul.f32 %v705, %v708
        %v726 = vld [vmem:[%s2] sm:$0x1]
        %v728 = vperm.slane %v726, 0
        %v730 = vadd.f32 %v710, %v728
        %v731 = vadd.f32 %v711, %v728
        %v732 = vadd.f32 %v712, %v728
        %v733 = vadd.f32 %v713, %v728
        %v734 = vadd.f32 %v714, %v728
        %v735 = vadd.f32 %v715, %v728
        %v736 = vadd.f32 %v716, %v728
        %v737 = vadd.f32 %v717, %v728
        %v738 = vadd.f32 %v718, %v728
        %v739 = vadd.f32 %v719, %v728
        %v740 = vadd.f32 %v720, %v728
        %v741 = vadd.f32 %v721, %v728
        %v742 = vadd.f32 %v722, %v728
        %v743 = vadd.f32 %v723, %v728
        %v744 = vadd.f32 %v724, %v728
        %v745 = vadd.f32 %v725, %v728
        %v746 = vpack.c.bf16 %v731, %v730
        %v747 = vpack.c.bf16 %v733, %v732
        %v748 = vpack.c.bf16 %v735, %v734
        %v749 = vpack.c.bf16 %v737, %v736
        %v750 = vpack.c.bf16 %v739, %v738
        %v751 = vpack.c.bf16 %v741, %v740
        %v752 = vpack.c.bf16 %v743, %v742
        %v753 = vpack.c.bf16 %v745, %v744
        %v754 = vld [vmem:[#allocation7] sm:$0xff]
        %v755 = vld [vmem:[#allocation7 + $0x8] sm:$0xff]
        %v756 = vld [vmem:[#allocation7 + $0x10] sm:$0xff]
        %v757 = vld [vmem:[#allocation7 + $0x18] sm:$0xff]
        %v758 = vld [vmem:[#allocation7 + $0x20] sm:$0xff]
        %v759 = vld [vmem:[#allocation7 + $0x28] sm:$0xff]
        %v760 = vld [vmem:[#allocation7 + $0x30] sm:$0xff]
        %v761 = vld [vmem:[#allocation7 + $0x38] sm:$0xff]
        %v762 = vld [vmem:[#allocation7 + $0x40] sm:$0xff]
        %v763 = vld [vmem:[#allocation7 + $0x48] sm:$0xff]
        %v764 = vld [vmem:[#allocation7 + $0x50] sm:$0xff]
        %v765 = vld [vmem:[#allocation7 + $0x58] sm:$0xff]
        %v766 = vld [vmem:[#allocation7 + $0x60] sm:$0xff]
        %v767 = vld [vmem:[#allocation7 + $0x68] sm:$0xff]
        %v768 = vld [vmem:[#allocation7 + $0x70] sm:$0xff]
        %v769 = vld [vmem:[#allocation7 + $0x78] sm:$0xff]
        %v770 = vld [vmem:[#allocation7 + $0x80] sm:$0xff]
        %v771 = vld [vmem:[#allocation7 + $0x88] sm:$0xff]
        %v772 = vld [vmem:[#allocation7 + $0x90] sm:$0xff]
        %v773 = vld [vmem:[#allocation7 + $0x98] sm:$0xff]
        %v774 = vld [vmem:[#allocation7 + $0xa0] sm:$0xff]
        %v775 = vld [vmem:[#allocation7 + $0xa8] sm:$0xff]
        %v776 = vld [vmem:[#allocation7 + $0xb0] sm:$0xff]
        %v777 = vld [vmem:[#allocation7 + $0xb8] sm:$0xff]
        %v778 = vld [vmem:[#allocation7 + $0xc0] sm:$0xff]
        %v779 = vld [vmem:[#allocation7 + $0xc8] sm:$0xff]
        %v780 = vld [vmem:[#allocation7 + $0xd0] sm:$0xff]
        %v781 = vld [vmem:[#allocation7 + $0xd8] sm:$0xff]
        %v782 = vld [vmem:[#allocation7 + $0xe0] sm:$0xff]
        %v783 = vld [vmem:[#allocation7 + $0xe8] sm:$0xff]
        %v784 = vld [vmem:[#allocation7 + $0xf0] sm:$0xff]
        %v785 = vld [vmem:[#allocation7 + $0xf8] sm:$0xff]
        %v786 = vld [vmem:[#allocation8] sm:$0xf]
        %v788 = vperm.slane %v786, 0
        %v789 = vperm.slane %v786, 1
        %v790 = vperm.slane %v786, 2
        %v791 = vperm.slane %v786, 3
        %v828 = vunpack.c.l.b16 %v754
        %v829 = vunpack.c.h.b16 %v754
        %v830 = vunpack.c.l.b16 %v755
        %v831 = vunpack.c.h.b16 %v755
        %v832 = vunpack.c.l.b16 %v756
        %v833 = vunpack.c.h.b16 %v756
        %v834 = vunpack.c.l.b16 %v757
        %v835 = vunpack.c.h.b16 %v757
        %v836 = vunpack.c.l.b16 %v758
        %v837 = vunpack.c.h.b16 %v758
        %v838 = vunpack.c.l.b16 %v759
        %v839 = vunpack.c.h.b16 %v759
        %v840 = vunpack.c.l.b16 %v760
        %v841 = vunpack.c.h.b16 %v760
        %v842 = vunpack.c.l.b16 %v761
        %v843 = vunpack.c.h.b16 %v761
        %v844 = vunpack.c.l.b16 %v762
        %v845 = vunpack.c.h.b16 %v762
        %v846 = vunpack.c.l.b16 %v763
        %v847 = vunpack.c.h.b16 %v763
        %v848 = vunpack.c.l.b16 %v764
        %v849 = vunpack.c.h.b16 %v764
        %v850 = vunpack.c.l.b16 %v765
        %v851 = vunpack.c.h.b16 %v765
        %v852 = vunpack.c.l.b16 %v766
        %v853 = vunpack.c.h.b16 %v766
        %v854 = vunpack.c.l.b16 %v767
        %v855 = vunpack.c.h.b16 %v767
        %v856 = vunpack.c.l.b16 %v768
        %v857 = vunpack.c.h.b16 %v768
        %v858 = vunpack.c.l.b16 %v769
        %v859 = vunpack.c.h.b16 %v769
        %v860 = vunpack.c.l.b16 %v770
        %v861 = vunpack.c.h.b16 %v770
        %v862 = vunpack.c.l.b16 %v771
        %v863 = vunpack.c.h.b16 %v771
        %v864 = vunpack.c.l.b16 %v772
        %v865 = vunpack.c.h.b16 %v772
        %v866 = vunpack.c.l.b16 %v773
        %v867 = vunpack.c.h.b16 %v773
        %v868 = vunpack.c.l.b16 %v774
        %v869 = vunpack.c.h.b16 %v774
        %v870 = vunpack.c.l.b16 %v775
        %v871 = vunpack.c.h.b16 %v775
        %v872 = vunpack.c.l.b16 %v776
        %v873 = vunpack.c.h.b16 %v776
        %v874 = vunpack.c.l.b16 %v777
        %v875 = vunpack.c.h.b16 %v777
        %v876 = vunpack.c.l.b16 %v778
        %v877 = vunpack.c.h.b16 %v778
        %v878 = vunpack.c.l.b16 %v779
        %v879 = vunpack.c.h.b16 %v779
        %v880 = vunpack.c.l.b16 %v780
        %v881 = vunpack.c.h.b16 %v780
        %v882 = vunpack.c.l.b16 %v781
        %v883 = vunpack.c.h.b16 %v781
        %v884 = vunpack.c.l.b16 %v782
        %v885 = vunpack.c.h.b16 %v782
        %v886 = vunpack.c.l.b16 %v783
        %v887 = vunpack.c.h.b16 %v783
        %v888 = vunpack.c.l.b16 %v784
        %v889 = vunpack.c.h.b16 %v784
        %v890 = vunpack.c.l.b16 %v785
        %v891 = vunpack.c.h.b16 %v785
        %v892 = vpack.c.b16 %v832, %v828
        %v893 = vpack.c.b16 %v833, %v829
        %v894 = vpack.c.b16 %v834, %v830
        %v895 = vpack.c.b16 %v835, %v831
        %v896 = vpack.c.b16 %v840, %v836
        %v897 = vpack.c.b16 %v841, %v837
        %v898 = vpack.c.b16 %v842, %v838
        %v899 = vpack.c.b16 %v843, %v839
        %v900 = vpack.c.b16 %v848, %v844
        %v901 = vpack.c.b16 %v849, %v845
        %v902 = vpack.c.b16 %v850, %v846
        %v903 = vpack.c.b16 %v851, %v847
        %v904 = vpack.c.b16 %v856, %v852
        %v905 = vpack.c.b16 %v857, %v853
        %v906 = vpack.c.b16 %v858, %v854
        %v907 = vpack.c.b16 %v859, %v855
        %v908 = vpack.c.b16 %v864, %v860
        %v909 = vpack.c.b16 %v865, %v861
        %v910 = vpack.c.b16 %v866, %v862
        %v911 = vpack.c.b16 %v867, %v863
        %v912 = vpack.c.b16 %v872, %v868
        %v913 = vpack.c.b16 %v873, %v869
        %v914 = vpack.c.b16 %v874, %v870
        %v915 = vpack.c.b16 %v875, %v871
        %v916 = vpack.c.b16 %v880, %v876
        %v917 = vpack.c.b16 %v881, %v877
        %v918 = vpack.c.b16 %v882, %v878
        %v919 = vpack.c.b16 %v883, %v879
        %v920 = vpack.c.b16 %v888, %v884
        %v921 = vpack.c.b16 %v889, %v885
        %v922 = vpack.c.b16 %v890, %v886
        %v923 = vpack.c.b16 %v891, %v887
        %956 = vmatpush.bf16.msra.mxu0 %v920
        %957 = vmatpush.bf16.msra.mxu0 %v916
        %958 = vmatpush.bf16.msra.mxu0 %v912
        %959 = vmatpush.bf16.msra.mxu0 %v908
        %960 = vmatpush.bf16.msra.mxu0 %v904
        %961 = vmatpush.bf16.msra.mxu0 %v900
        %962 = vmatpush.bf16.msra.mxu0 %v896
        %963 = vmatpush.bf16.msra.mxu0 %v892
        %964 = vmatmul.bf16.gmra.mxu0 %v746
        %v965 = vpop.f32.mrf.mxu0
        %v966 = vadd.f32 %v788, %v965
        %v967 = vpop.f32.mrf.mxu0
        %v968 = vadd.f32 %v788, %v967
        %969 = vmatmul.bf16.gmra.mxu0 %v747
        %v970 = vpop.f32.mrf.mxu0
        %v971 = vadd.f32 %v788, %v970
        %v972 = vpop.f32.mrf.mxu0
        %v973 = vadd.f32 %v788, %v972
        %974 = vmatmul.bf16.gmra.mxu0 %v748
        %v975 = vpop.f32.mrf.mxu0
        %v976 = vadd.f32 %v788, %v975
        %v977 = vpop.f32.mrf.mxu0
        %v978 = vadd.f32 %v788, %v977
        %979 = vmatmul.bf16.gmra.mxu0 %v749
        %v980 = vpop.f32.mrf.mxu0
        %v981 = vadd.f32 %v788, %v980
        %v982 = vpop.f32.mrf.mxu0
        %v983 = vadd.f32 %v788, %v982
        %984 = vmatmul.bf16.gmra.mxu0 %v750
        %v985 = vpop.f32.mrf.mxu0
        %v986 = vadd.f32 %v788, %v985
        %v987 = vpop.f32.mrf.mxu0
        %v988 = vadd.f32 %v788, %v987
        %989 = vmatmul.bf16.gmra.mxu0 %v751
        %v990 = vpop.f32.mrf.mxu0
        %v991 = vadd.f32 %v788, %v990
        %v992 = vpop.f32.mrf.mxu0
        %v993 = vadd.f32 %v788, %v992
        %994 = vmatmul.bf16.gmra.mxu0 %v752
        %v995 = vpop.f32.mrf.mxu0
        %v996 = vadd.f32 %v788, %v995
        %v997 = vpop.f32.mrf.mxu0
        %v998 = vadd.f32 %v788, %v997
        %999 = vmatmul.bf16.gmra.mxu0 %v753
        %v1000 = vpop.f32.mrf.mxu0
        %v1001 = vadd.f32 %v788, %v1000
        %v1002 = vpop.f32.mrf.mxu0
        %v1003 = vadd.f32 %v788, %v1002
        %1004 = vdwg.mxu0
        %1005 = vmatpush.bf16.msra.mxu0 %v921
        %1006 = vmatpush.bf16.msra.mxu0 %v917
        %1007 = vmatpush.bf16.msra.mxu0 %v913
        %1008 = vmatpush.bf16.msra.mxu0 %v909
        %1009 = vmatpush.bf16.msra.mxu0 %v905
        %1010 = vmatpush.bf16.msra.mxu0 %v901
        %1011 = vmatpush.bf16.msra.mxu0 %v897
        %1012 = vmatpush.bf16.msra.mxu0 %v893
        %1013 = vmatmul.bf16.gmra.mxu0 %v746
        %v1014 = vpop.f32.mrf.mxu0
        %v1015 = vadd.f32 %v789, %v1014
        %v1016 = vpop.f32.mrf.mxu0
        %v1017 = vadd.f32 %v789, %v1016
        %1018 = vmatmul.bf16.gmra.mxu0 %v747
        %v1019 = vpop.f32.mrf.mxu0
        %v1020 = vadd.f32 %v789, %v1019
        %v1021 = vpop.f32.mrf.mxu0
        %v1022 = vadd.f32 %v789, %v1021
        %1023 = vmatmul.bf16.gmra.mxu0 %v748
        %v1024 = vpop.f32.mrf.mxu0
        %v1025 = vadd.f32 %v789, %v1024
        %v1026 = vpop.f32.mrf.mxu0
        %v1027 = vadd.f32 %v789, %v1026
        %1028 = vmatmul.bf16.gmra.mxu0 %v749
        %v1029 = vpop.f32.mrf.mxu0
        %v1030 = vadd.f32 %v789, %v1029
        %v1031 = vpop.f32.mrf.mxu0
        %v1032 = vadd.f32 %v789, %v1031
        %1033 = vmatmul.bf16.gmra.mxu0 %v750
        %v1034 = vpop.f32.mrf.mxu0
        %v1035 = vadd.f32 %v789, %v1034
        %v1036 = vpop.f32.mrf.mxu0
        %v1037 = vadd.f32 %v789, %v1036
        %1038 = vmatmul.bf16.gmra.mxu0 %v751
        %v1039 = vpop.f32.mrf.mxu0
        %v1040 = vadd.f32 %v789, %v1039
        %v1041 = vpop.f32.mrf.mxu0
        %v1042 = vadd.f32 %v789, %v1041
        %1043 = vmatmul.bf16.gmra.mxu0 %v752
        %v1044 = vpop.f32.mrf.mxu0
        %v1045 = vadd.f32 %v789, %v1044
        %v1046 = vpop.f32.mrf.mxu0
        %v1047 = vadd.f32 %v789, %v1046
        %1048 = vmatmul.bf16.gmra.mxu0 %v753
        %v1049 = vpop.f32.mrf.mxu0
        %v1050 = vadd.f32 %v789, %v1049
        %v1051 = vpop.f32.mrf.mxu0
        %v1052 = vadd.f32 %v789, %v1051
        %1053 = vdwg.mxu0
        %1054 = vmatpush.bf16.msra.mxu0 %v922
        %1055 = vmatpush.bf16.msra.mxu0 %v918
        %1056 = vmatpush.bf16.msra.mxu0 %v914
        %1057 = vmatpush.bf16.msra.mxu0 %v910
        %1058 = vmatpush.bf16.msra.mxu0 %v906
        %1059 = vmatpush.bf16.msra.mxu0 %v902
        %1060 = vmatpush.bf16.msra.mxu0 %v898
        %1061 = vmatpush.bf16.msra.mxu0 %v894
        %1062 = vmatmul.bf16.gmra.mxu0 %v746
        %v1063 = vpop.f32.mrf.mxu0
        %v1064 = vadd.f32 %v790, %v1063
        %v1065 = vpop.f32.mrf.mxu0
        %v1066 = vadd.f32 %v790, %v1065
        %1067 = vmatmul.bf16.gmra.mxu0 %v747
        %v1068 = vpop.f32.mrf.mxu0
        %v1069 = vadd.f32 %v790, %v1068
        %v1070 = vpop.f32.mrf.mxu0
        %v1071 = vadd.f32 %v790, %v1070
        %1072 = vmatmul.bf16.gmra.mxu0 %v748
        %v1073 = vpop.f32.mrf.mxu0
        %v1074 = vadd.f32 %v790, %v1073
        %v1075 = vpop.f32.mrf.mxu0
        %v1076 = vadd.f32 %v790, %v1075
        %1077 = vmatmul.bf16.gmra.mxu0 %v749
        %v1078 = vpop.f32.mrf.mxu0
        %v1079 = vadd.f32 %v790, %v1078
        %v1080 = vpop.f32.mrf.mxu0
        %v1081 = vadd.f32 %v790, %v1080
        %1082 = vmatmul.bf16.gmra.mxu0 %v750
        %v1083 = vpop.f32.mrf.mxu0
        %v1084 = vadd.f32 %v790, %v1083
        %v1085 = vpop.f32.mrf.mxu0
        %v1086 = vadd.f32 %v790, %v1085
        %1087 = vmatmul.bf16.gmra.mxu0 %v751
        %v1088 = vpop.f32.mrf.mxu0
        %v1089 = vadd.f32 %v790, %v1088
        %v1090 = vpop.f32.mrf.mxu0
        %v1091 = vadd.f32 %v790, %v1090
        %1092 = vmatmul.bf16.gmra.mxu0 %v752
        %v1093 = vpop.f32.mrf.mxu0
        %v1094 = vadd.f32 %v790, %v1093
        %v1095 = vpop.f32.mrf.mxu0
        %v1096 = vadd.f32 %v790, %v1095
        %1097 = vmatmul.bf16.gmra.mxu0 %v753
        %v1098 = vpop.f32.mrf.mxu0
        %v1099 = vadd.f32 %v790, %v1098
        %v1100 = vpop.f32.mrf.mxu0
        %v1101 = vadd.f32 %v790, %v1100
        %1102 = vdwg.mxu0
        %1103 = vmatpush.bf16.msra.mxu0 %v923
        %1104 = vmatpush.bf16.msra.mxu0 %v919
        %1105 = vmatpush.bf16.msra.mxu0 %v915
        %1106 = vmatpush.bf16.msra.mxu0 %v911
        %1107 = vmatpush.bf16.msra.mxu0 %v907
        %1108 = vmatpush.bf16.msra.mxu0 %v903
        %1109 = vmatpush.bf16.msra.mxu0 %v899
        %1110 = vmatpush.bf16.msra.mxu0 %v895
        %1111 = vmatmul.bf16.gmra.mxu0 %v746
        %v1112 = vpop.f32.mrf.mxu0
        %v1113 = vadd.f32 %v791, %v1112
        %v1114 = vpop.f32.mrf.mxu0
        %v1115 = vadd.f32 %v791, %v1114
        %1116 = vmatmul.bf16.gmra.mxu0 %v747
        %v1117 = vpop.f32.mrf.mxu0
        %v1118 = vadd.f32 %v791, %v1117
        %v1119 = vpop.f32.mrf.mxu0
        %v1120 = vadd.f32 %v791, %v1119
        %1121 = vmatmul.bf16.gmra.mxu0 %v748
        %v1122 = vpop.f32.mrf.mxu0
        %v1123 = vadd.f32 %v791, %v1122
        %v1124 = vpop.f32.mrf.mxu0
        %v1125 = vadd.f32 %v791, %v1124
        %1126 = vmatmul.bf16.gmra.mxu0 %v749
        %v1127 = vpop.f32.mrf.mxu0
        %v1128 = vadd.f32 %v791, %v1127
        %v1129 = vpop.f32.mrf.mxu0
        %v1130 = vadd.f32 %v791, %v1129
        %1131 = vmatmul.bf16.gmra.mxu0 %v750
        %v1132 = vpop.f32.mrf.mxu0
        %v1133 = vadd.f32 %v791, %v1132
        %v1134 = vpop.f32.mrf.mxu0
        %v1135 = vadd.f32 %v791, %v1134
        %1136 = vmatmul.bf16.gmra.mxu0 %v751
        %v1137 = vpop.f32.mrf.mxu0
        %v1138 = vadd.f32 %v791, %v1137
        %v1139 = vpop.f32.mrf.mxu0
        %v1140 = vadd.f32 %v791, %v1139
        %1141 = vmatmul.bf16.gmra.mxu0 %v752
        %v1142 = vpop.f32.mrf.mxu0
        %v1143 = vadd.f32 %v791, %v1142
        %v1144 = vpop.f32.mrf.mxu0
        %v1145 = vadd.f32 %v791, %v1144
        %1146 = vmatmul.bf16.gmra.mxu0 %v753
        %v1147 = vpop.f32.mrf.mxu0
        %v1148 = vadd.f32 %v791, %v1147
        %v1149 = vpop.f32.mrf.mxu0
        %v1150 = vadd.f32 %v791, %v1149
        %1151 = vdwg.mxu0
        %v1152 = vxor.u32 %v966, 2147483648
        %v1153 = vxor.u32 %v1015, 2147483648
        %v1154 = vxor.u32 %v1064, 2147483648
        %v1155 = vxor.u32 %v1113, 2147483648
        %v1156 = vxor.u32 %v968, 2147483648
        %v1157 = vxor.u32 %v1017, 2147483648
        %v1158 = vxor.u32 %v1066, 2147483648
        %v1159 = vxor.u32 %v1115, 2147483648
        %v1160 = vxor.u32 %v971, 2147483648
        %v1161 = vxor.u32 %v1020, 2147483648
        %v1162 = vxor.u32 %v1069, 2147483648
        %v1163 = vxor.u32 %v1118, 2147483648
        %v1164 = vxor.u32 %v973, 2147483648
        %v1165 = vxor.u32 %v1022, 2147483648
        %v1166 = vxor.u32 %v1071, 2147483648
        %v1167 = vxor.u32 %v1120, 2147483648
        %v1168 = vxor.u32 %v976, 2147483648
        %v1169 = vxor.u32 %v1025, 2147483648
        %v1170 = vxor.u32 %v1074, 2147483648
        %v1171 = vxor.u32 %v1123, 2147483648
        %v1172 = vxor.u32 %v978, 2147483648
        %v1173 = vxor.u32 %v1027, 2147483648
        %v1174 = vxor.u32 %v1076, 2147483648
        %v1175 = vxor.u32 %v1125, 2147483648
        %v1176 = vxor.u32 %v981, 2147483648
        %v1177 = vxor.u32 %v1030, 2147483648
        %v1178 = vxor.u32 %v1079, 2147483648
        %v1179 = vxor.u32 %v1128, 2147483648
        %v1180 = vxor.u32 %v983, 2147483648
        %v1181 = vxor.u32 %v1032, 2147483648
        %v1182 = vxor.u32 %v1081, 2147483648
        %v1183 = vxor.u32 %v1130, 2147483648
        %v1184 = vxor.u32 %v986, 2147483648
        %v1185 = vxor.u32 %v1035, 2147483648
        %v1186 = vxor.u32 %v1084, 2147483648
        %v1187 = vxor.u32 %v1133, 2147483648
        %v1188 = vxor.u32 %v988, 2147483648
        %v1189 = vxor.u32 %v1037, 2147483648
        %v1190 = vxor.u32 %v1086, 2147483648
        %v1191 = vxor.u32 %v1135, 2147483648
        %v1192 = vxor.u32 %v991, 2147483648
        %v1193 = vxor.u32 %v1040, 2147483648
        %v1194 = vxor.u32 %v1089, 2147483648
        %v1195 = vxor.u32 %v1138, 2147483648
        %v1196 = vxor.u32 %v993, 2147483648
        %v1197 = vxor.u32 %v1042, 2147483648
        %v1198 = vxor.u32 %v1091, 2147483648
        %v1199 = vxor.u32 %v1140, 2147483648
        %v1200 = vxor.u32 %v996, 2147483648
        %v1201 = vxor.u32 %v1045, 2147483648
        %v1202 = vxor.u32 %v1094, 2147483648
        %v1203 = vxor.u32 %v1143, 2147483648
        %v1204 = vxor.u32 %v998, 2147483648
        %v1205 = vxor.u32 %v1047, 2147483648
        %v1206 = vxor.u32 %v1096, 2147483648
        %v1207 = vxor.u32 %v1145, 2147483648
        %v1208 = vxor.u32 %v1001, 2147483648
        %v1209 = vxor.u32 %v1050, 2147483648
        %v1210 = vxor.u32 %v1099, 2147483648
        %v1211 = vxor.u32 %v1148, 2147483648
        %v1212 = vxor.u32 %v1003, 2147483648
        %v1213 = vxor.u32 %v1052, 2147483648
        %v1214 = vxor.u32 %v1101, 2147483648
        %v1215 = vxor.u32 %v1150, 2147483648
        %v1216 = vmul.f32 %v1152, 1.442695
        %v1217 = vpow.pop %v1216
        %v1218 = vmul.f32 %v1153, 1.442695
        %v1219 = vpow.pop %v1218
        %v1220 = vmul.f32 %v1154, 1.442695
        %v1221 = vpow.pop %v1220
        %v1222 = vmul.f32 %v1155, 1.442695
        %v1223 = vpow.pop %v1222
        %v1224 = vmul.f32 %v1156, 1.442695
        %v1225 = vpow.pop %v1224
        %v1226 = vmul.f32 %v1157, 1.442695
        %v1227 = vpow.pop %v1226
        %v1228 = vmul.f32 %v1158, 1.442695
        %v1229 = vpow.pop %v1228
        %v1230 = vmul.f32 %v1159, 1.442695
        %v1231 = vpow.pop %v1230
        %v1232 = vmul.f32 %v1160, 1.442695
        %v1233 = vpow.pop %v1232
        %v1234 = vmul.f32 %v1161, 1.442695
        %v1235 = vpow.pop %v1234
        %v1236 = vmul.f32 %v1162, 1.442695
        %v1237 = vpow.pop %v1236
        %v1238 = vmul.f32 %v1163, 1.442695
        %v1239 = vpow.pop %v1238
        %v1240 = vmul.f32 %v1164, 1.442695
        %v1241 = vpow.pop %v1240
        %v1242 = vmul.f32 %v1165, 1.442695
        %v1243 = vpow.pop %v1242
        %v1244 = vmul.f32 %v1166, 1.442695
        %v1245 = vpow.pop %v1244
        %v1246 = vmul.f32 %v1167, 1.442695
        %v1247 = vpow.pop %v1246
        %v1248 = vmul.f32 %v1168, 1.442695
        %v1249 = vpow.pop %v1248
        %v1250 = vmul.f32 %v1169, 1.442695
        %v1251 = vpow.pop %v1250
        %v1252 = vmul.f32 %v1170, 1.442695
        %v1253 = vpow.pop %v1252
        %v1254 = vmul.f32 %v1171, 1.442695
        %v1255 = vpow.pop %v1254
        %v1256 = vmul.f32 %v1172, 1.442695
        %v1257 = vpow.pop %v1256
        %v1258 = vmul.f32 %v1173, 1.442695
        %v1259 = vpow.pop %v1258
        %v1260 = vmul.f32 %v1174, 1.442695
        %v1261 = vpow.pop %v1260
        %v1262 = vmul.f32 %v1175, 1.442695
        %v1263 = vpow.pop %v1262
        %v1264 = vmul.f32 %v1176, 1.442695
        %v1265 = vpow.pop %v1264
        %v1266 = vmul.f32 %v1177, 1.442695
        %v1267 = vpow.pop %v1266
        %v1268 = vmul.f32 %v1178, 1.442695
        %v1269 = vpow.pop %v1268
        %v1270 = vmul.f32 %v1179, 1.442695
        %v1271 = vpow.pop %v1270
        %v1272 = vmul.f32 %v1180, 1.442695
        %v1273 = vpow.pop %v1272
        %v1274 = vmul.f32 %v1181, 1.442695
        %v1275 = vpow.pop %v1274
        %v1276 = vmul.f32 %v1182, 1.442695
        %v1277 = vpow.pop %v1276
        %v1278 = vmul.f32 %v1183, 1.442695
        %v1279 = vpow.pop %v1278
        %v1280 = vmul.f32 %v1184, 1.442695
        %v1281 = vpow.pop %v1280
        %v1282 = vmul.f32 %v1185, 1.442695
        %v1283 = vpow.pop %v1282
        %v1284 = vmul.f32 %v1186, 1.442695
        %v1285 = vpow.pop %v1284
        %v1286 = vmul.f32 %v1187, 1.442695
        %v1287 = vpow.pop %v1286
        %v1288 = vmul.f32 %v1188, 1.442695
        %v1289 = vpow.pop %v1288
        %v1290 = vmul.f32 %v1189, 1.442695
        %v1291 = vpow.pop %v1290
        %v1292 = vmul.f32 %v1190, 1.442695
        %v1293 = vpow.pop %v1292
        %v1294 = vmul.f32 %v1191, 1.442695
        %v1295 = vpow.pop %v1294
        %v1296 = vmul.f32 %v1192, 1.442695
        %v1297 = vpow.pop %v1296
        %v1298 = vmul.f32 %v1193, 1.442695
        %v1299 = vpow.pop %v1298
        %v1300 = vmul.f32 %v1194, 1.442695
        %v1301 = vpow.pop %v1300
        %v1302 = vmul.f32 %v1195, 1.442695
        %v1303 = vpow.pop %v1302
        %v1304 = vmul.f32 %v1196, 1.442695
        %v1305 = vpow.pop %v1304
        %v1306 = vmul.f32 %v1197, 1.442695
        %v1307 = vpow.pop %v1306
        %v1308 = vmul.f32 %v1198, 1.442695
        %v1309 = vpow.pop %v1308
        %v1310 = vmul.f32 %v1199, 1.442695
        %v1311 = vpow.pop %v1310
        %v1312 = vmul.f32 %v1200, 1.442695
        %v1313 = vpow.pop %v1312
        %v1314 = vmul.f32 %v1201, 1.442695
        %v1315 = vpow.pop %v1314
        %v1316 = vmul.f32 %v1202, 1.442695
        %v1317 = vpow.pop %v1316
        %v1318 = vmul.f32 %v1203, 1.442695
        %v1319 = vpow.pop %v1318
        %v1320 = vmul.f32 %v1204, 1.442695
        %v1321 = vpow.pop %v1320
        %v1322 = vmul.f32 %v1205, 1.442695
        %v1323 = vpow.pop %v1322
        %v1324 = vmul.f32 %v1206, 1.442695
        %v1325 = vpow.pop %v1324
        %v1326 = vmul.f32 %v1207, 1.442695
        %v1327 = vpow.pop %v1326
        %v1328 = vmul.f32 %v1208, 1.442695
        %v1329 = vpow.pop %v1328
        %v1330 = vmul.f32 %v1209, 1.442695
        %v1331 = vpow.pop %v1330
        %v1332 = vmul.f32 %v1210, 1.442695
        %v1333 = vpow.pop %v1332
        %v1334 = vmul.f32 %v1211, 1.442695
        %v1335 = vpow.pop %v1334
        %v1336 = vmul.f32 %v1212, 1.442695
        %v1337 = vpow.pop %v1336
        %v1338 = vmul.f32 %v1213, 1.442695
        %v1339 = vpow.pop %v1338
        %v1340 = vmul.f32 %v1214, 1.442695
        %v1341 = vpow.pop %v1340
        %v1342 = vmul.f32 %v1215, 1.442695
        %v1343 = vpow.pop %v1342
        %v1344 = vadd.f32 %v1217, 1.0
        %v1345 = vadd.f32 %v1219, 1.0
        %v1346 = vadd.f32 %v1221, 1.0
        %v1347 = vadd.f32 %v1223, 1.0
        %v1348 = vadd.f32 %v1225, 1.0
        %v1349 = vadd.f32 %v1227, 1.0
        %v1350 = vadd.f32 %v1229, 1.0
        %v1351 = vadd.f32 %v1231, 1.0
        %v1352 = vadd.f32 %v1233, 1.0
        %v1353 = vadd.f32 %v1235, 1.0
        %v1354 = vadd.f32 %v1237, 1.0
        %v1355 = vadd.f32 %v1239, 1.0
        %v1356 = vadd.f32 %v1241, 1.0
        %v1357 = vadd.f32 %v1243, 1.0
        %v1358 = vadd.f32 %v1245, 1.0
        %v1359 = vadd.f32 %v1247, 1.0
        %v1360 = vadd.f32 %v1249, 1.0
        %v1361 = vadd.f32 %v1251, 1.0
        %v1362 = vadd.f32 %v1253, 1.0
        %v1363 = vadd.f32 %v1255, 1.0
        %v1364 = vadd.f32 %v1257, 1.0
        %v1365 = vadd.f32 %v1259, 1.0
        %v1366 = vadd.f32 %v1261, 1.0
        %v1367 = vadd.f32 %v1263, 1.0
        %v1368 = vadd.f32 %v1265, 1.0
        %v1369 = vadd.f32 %v1267, 1.0
        %v1370 = vadd.f32 %v1269, 1.0
        %v1371 = vadd.f32 %v1271, 1.0
        %v1372 = vadd.f32 %v1273, 1.0
        %v1373 = vadd.f32 %v1275, 1.0
        %v1374 = vadd.f32 %v1277, 1.0
        %v1375 = vadd.f32 %v1279, 1.0
        %v1376 = vadd.f32 %v1281, 1.0
        %v1377 = vadd.f32 %v1283, 1.0
        %v1378 = vadd.f32 %v1285, 1.0
        %v1379 = vadd.f32 %v1287, 1.0
        %v1380 = vadd.f32 %v1289, 1.0
        %v1381 = vadd.f32 %v1291, 1.0
        %v1382 = vadd.f32 %v1293, 1.0
        %v1383 = vadd.f32 %v1295, 1.0
        %v1384 = vadd.f32 %v1297, 1.0
        %v1385 = vadd.f32 %v1299, 1.0
        %v1386 = vadd.f32 %v1301, 1.0
        %v1387 = vadd.f32 %v1303, 1.0
        %v1388 = vadd.f32 %v1305, 1.0
        %v1389 = vadd.f32 %v1307, 1.0
        %v1390 = vadd.f32 %v1309, 1.0
        %v1391 = vadd.f32 %v1311, 1.0
        %v1392 = vadd.f32 %v1313, 1.0
        %v1393 = vadd.f32 %v1315, 1.0
        %v1394 = vadd.f32 %v1317, 1.0
        %v1395 = vadd.f32 %v1319, 1.0
        %v1396 = vadd.f32 %v1321, 1.0
        %v1397 = vadd.f32 %v1323, 1.0
        %v1398 = vadd.f32 %v1325, 1.0
        %v1399 = vadd.f32 %v1327, 1.0
        %v1400 = vadd.f32 %v1329, 1.0
        %v1401 = vadd.f32 %v1331, 1.0
        %v1402 = vadd.f32 %v1333, 1.0
        %v1403 = vadd.f32 %v1335, 1.0
        %v1404 = vadd.f32 %v1337, 1.0
        %v1405 = vadd.f32 %v1339, 1.0
        %v1406 = vadd.f32 %v1341, 1.0
        %v1407 = vadd.f32 %v1343, 1.0
        %v1408 = vrcp.pop %v1344
        %v1409 = vmul.f32 %v1344, %v1408
        %v1410 = vsub.f32 1.0, %v1409
        %v1411 = vmul.f32 %v1408, %v1410
        %v1412 = vadd.f32 %v1408, %v1411
        %vm1413 = vweird.f32 %v1344
        %vm1414 = vweird.f32 %v1408
        %vm1415 = vmor %vm1413, %vm1414
        %v1416 = vsel %vm1415, %v1408, %v1412
        %v1417 = vand.u32 2147483647, %v1344
        %vm1418 = vcmp.eq.f32.partialorder %v1417, 8.507059e+37
        %v1419 = vand.u32 %v1344, 2147483648
        %v1420 = vor.u32 1.1754944e-38, %v1419
        %v1421 = vsel %vm1418, %v1420, %v1416
        %v1422 = vmul.f32 1.0, %v1421
        %v1423 = vrcp.pop %v1345
        %v1424 = vmul.f32 %v1345, %v1423
        %v1425 = vsub.f32 1.0, %v1424
        %v1426 = vmul.f32 %v1423, %v1425
        %v1427 = vadd.f32 %v1423, %v1426
        %vm1428 = vweird.f32 %v1345
        %vm1429 = vweird.f32 %v1423
        %vm1430 = vmor %vm1428, %vm1429
        %v1431 = vsel %vm1430, %v1423, %v1427
        %v1432 = vand.u32 2147483647, %v1345
        %vm1433 = vcmp.eq.f32.partialorder %v1432, 8.507059e+37
        %v1434 = vand.u32 %v1345, 2147483648
        %v1435 = vor.u32 1.1754944e-38, %v1434
        %v1436 = vsel %vm1433, %v1435, %v1431
        %v1437 = vmul.f32 1.0, %v1436
        %v1438 = vrcp.pop %v1346
        %v1439 = vmul.f32 %v1346, %v1438
        %v1440 = vsub.f32 1.0, %v1439
        %v1441 = vmul.f32 %v1438, %v1440
        %v1442 = vadd.f32 %v1438, %v1441
        %vm1443 = vweird.f32 %v1346
        %vm1444 = vweird.f32 %v1438
        %vm1445 = vmor %vm1443, %vm1444
        %v1446 = vsel %vm1445, %v1438, %v1442
        %v1447 = vand.u32 2147483647, %v1346
        %vm1448 = vcmp.eq.f32.partialorder %v1447, 8.507059e+37
        %v1449 = vand.u32 %v1346, 2147483648
        %v1450 = vor.u32 1.1754944e-38, %v1449
        %v1451 = vsel %vm1448, %v1450, %v1446
        %v1452 = vmul.f32 1.0, %v1451
        %v1453 = vrcp.pop %v1347
        %v1454 = vmul.f32 %v1347, %v1453
        %v1455 = vsub.f32 1.0, %v1454
        %v1456 = vmul.f32 %v1453, %v1455
        %v1457 = vadd.f32 %v1453, %v1456
        %vm1458 = vweird.f32 %v1347
        %vm1459 = vweird.f32 %v1453
        %vm1460 = vmor %vm1458, %vm1459
        %v1461 = vsel %vm1460, %v1453, %v1457
        %v1462 = vand.u32 2147483647, %v1347
        %vm1463 = vcmp.eq.f32.partialorder %v1462, 8.507059e+37
        %v1464 = vand.u32 %v1347, 2147483648
        %v1465 = vor.u32 1.1754944e-38, %v1464
        %v1466 = vsel %vm1463, %v1465, %v1461
        %v1467 = vmul.f32 1.0, %v1466
        %v1468 = vrcp.pop %v1348
        %v1469 = vmul.f32 %v1348, %v1468
        %v1470 = vsub.f32 1.0, %v1469
        %v1471 = vmul.f32 %v1468, %v1470
        %v1472 = vadd.f32 %v1468, %v1471
        %vm1473 = vweird.f32 %v1348
        %vm1474 = vweird.f32 %v1468
        %vm1475 = vmor %vm1473, %vm1474
        %v1476 = vsel %vm1475, %v1468, %v1472
        %v1477 = vand.u32 2147483647, %v1348
        %vm1478 = vcmp.eq.f32.partialorder %v1477, 8.507059e+37
        %v1479 = vand.u32 %v1348, 2147483648
        %v1480 = vor.u32 1.1754944e-38, %v1479
        %v1481 = vsel %vm1478, %v1480, %v1476
        %v1482 = vmul.f32 1.0, %v1481
        %v1483 = vrcp.pop %v1349
        %v1484 = vmul.f32 %v1349, %v1483
        %v1485 = vsub.f32 1.0, %v1484
        %v1486 = vmul.f32 %v1483, %v1485
        %v1487 = vadd.f32 %v1483, %v1486
        %vm1488 = vweird.f32 %v1349
        %vm1489 = vweird.f32 %v1483
        %vm1490 = vmor %vm1488, %vm1489
        %v1491 = vsel %vm1490, %v1483, %v1487
        %v1492 = vand.u32 2147483647, %v1349
        %vm1493 = vcmp.eq.f32.partialorder %v1492, 8.507059e+37
        %v1494 = vand.u32 %v1349, 2147483648
        %v1495 = vor.u32 1.1754944e-38, %v1494
        %v1496 = vsel %vm1493, %v1495, %v1491
        %v1497 = vmul.f32 1.0, %v1496
        %v1498 = vrcp.pop %v1350
        %v1499 = vmul.f32 %v1350, %v1498
        %v1500 = vsub.f32 1.0, %v1499
        %v1501 = vmul.f32 %v1498, %v1500
        %v1502 = vadd.f32 %v1498, %v1501
        %vm1503 = vweird.f32 %v1350
        %vm1504 = vweird.f32 %v1498
        %vm1505 = vmor %vm1503, %vm1504
        %v1506 = vsel %vm1505, %v1498, %v1502
        %v1507 = vand.u32 2147483647, %v1350
        %vm1508 = vcmp.eq.f32.partialorder %v1507, 8.507059e+37
        %v1509 = vand.u32 %v1350, 2147483648
        %v1510 = vor.u32 1.1754944e-38, %v1509
        %v1511 = vsel %vm1508, %v1510, %v1506
        %v1512 = vmul.f32 1.0, %v1511
        %v1513 = vrcp.pop %v1351
        %v1514 = vmul.f32 %v1351, %v1513
        %v1515 = vsub.f32 1.0, %v1514
        %v1516 = vmul.f32 %v1513, %v1515
        %v1517 = vadd.f32 %v1513, %v1516
        %vm1518 = vweird.f32 %v1351
        %vm1519 = vweird.f32 %v1513
        %vm1520 = vmor %vm1518, %vm1519
        %v1521 = vsel %vm1520, %v1513, %v1517
        %v1522 = vand.u32 2147483647, %v1351
        %vm1523 = vcmp.eq.f32.partialorder %v1522, 8.507059e+37
        %v1524 = vand.u32 %v1351, 2147483648
        %v1525 = vor.u32 1.1754944e-38, %v1524
        %v1526 = vsel %vm1523, %v1525, %v1521
        %v1527 = vmul.f32 1.0, %v1526
        %v1528 = vrcp.pop %v1352
        %v1529 = vmul.f32 %v1352, %v1528
        %v1530 = vsub.f32 1.0, %v1529
        %v1531 = vmul.f32 %v1528, %v1530
        %v1532 = vadd.f32 %v1528, %v1531
        %vm1533 = vweird.f32 %v1352
        %vm1534 = vweird.f32 %v1528
        %vm1535 = vmor %vm1533, %vm1534
        %v1536 = vsel %vm1535, %v1528, %v1532
        %v1537 = vand.u32 2147483647, %v1352
        %vm1538 = vcmp.eq.f32.partialorder %v1537, 8.507059e+37
        %v1539 = vand.u32 %v1352, 2147483648
        %v1540 = vor.u32 1.1754944e-38, %v1539
        %v1541 = vsel %vm1538, %v1540, %v1536
        %v1542 = vmul.f32 1.0, %v1541
        %v1543 = vrcp.pop %v1353
        %v1544 = vmul.f32 %v1353, %v1543
        %v1545 = vsub.f32 1.0, %v1544
        %v1546 = vmul.f32 %v1543, %v1545
        %v1547 = vadd.f32 %v1543, %v1546
        %vm1548 = vweird.f32 %v1353
        %vm1549 = vweird.f32 %v1543
        %vm1550 = vmor %vm1548, %vm1549
        %v1551 = vsel %vm1550, %v1543, %v1547
        %v1552 = vand.u32 2147483647, %v1353
        %vm1553 = vcmp.eq.f32.partialorder %v1552, 8.507059e+37
        %v1554 = vand.u32 %v1353, 2147483648
        %v1555 = vor.u32 1.1754944e-38, %v1554
        %v1556 = vsel %vm1553, %v1555, %v1551
        %v1557 = vmul.f32 1.0, %v1556
        %v1558 = vrcp.pop %v1354
        %v1559 = vmul.f32 %v1354, %v1558
        %v1560 = vsub.f32 1.0, %v1559
        %v1561 = vmul.f32 %v1558, %v1560
        %v1562 = vadd.f32 %v1558, %v1561
        %vm1563 = vweird.f32 %v1354
        %vm1564 = vweird.f32 %v1558
        %vm1565 = vmor %vm1563, %vm1564
        %v1566 = vsel %vm1565, %v1558, %v1562
        %v1567 = vand.u32 2147483647, %v1354
        %vm1568 = vcmp.eq.f32.partialorder %v1567, 8.507059e+37
        %v1569 = vand.u32 %v1354, 2147483648
        %v1570 = vor.u32 1.1754944e-38, %v1569
        %v1571 = vsel %vm1568, %v1570, %v1566
        %v1572 = vmul.f32 1.0, %v1571
        %v1573 = vrcp.pop %v1355
        %v1574 = vmul.f32 %v1355, %v1573
        %v1575 = vsub.f32 1.0, %v1574
        %v1576 = vmul.f32 %v1573, %v1575
        %v1577 = vadd.f32 %v1573, %v1576
        %vm1578 = vweird.f32 %v1355
        %vm1579 = vweird.f32 %v1573
        %vm1580 = vmor %vm1578, %vm1579
        %v1581 = vsel %vm1580, %v1573, %v1577
        %v1582 = vand.u32 2147483647, %v1355
        %vm1583 = vcmp.eq.f32.partialorder %v1582, 8.507059e+37
        %v1584 = vand.u32 %v1355, 2147483648
        %v1585 = vor.u32 1.1754944e-38, %v1584
        %v1586 = vsel %vm1583, %v1585, %v1581
        %v1587 = vmul.f32 1.0, %v1586
        %v1588 = vrcp.pop %v1356
        %v1589 = vmul.f32 %v1356, %v1588
        %v1590 = vsub.f32 1.0, %v1589
        %v1591 = vmul.f32 %v1588, %v1590
        %v1592 = vadd.f32 %v1588, %v1591
        %vm1593 = vweird.f32 %v1356
        %vm1594 = vweird.f32 %v1588
        %vm1595 = vmor %vm1593, %vm1594
        %v1596 = vsel %vm1595, %v1588, %v1592
        %v1597 = vand.u32 2147483647, %v1356
        %vm1598 = vcmp.eq.f32.partialorder %v1597, 8.507059e+37
        %v1599 = vand.u32 %v1356, 2147483648
        %v1600 = vor.u32 1.1754944e-38, %v1599
        %v1601 = vsel %vm1598, %v1600, %v1596
        %v1602 = vmul.f32 1.0, %v1601
        %v1603 = vrcp.pop %v1357
        %v1604 = vmul.f32 %v1357, %v1603
        %v1605 = vsub.f32 1.0, %v1604
        %v1606 = vmul.f32 %v1603, %v1605
        %v1607 = vadd.f32 %v1603, %v1606
        %vm1608 = vweird.f32 %v1357
        %vm1609 = vweird.f32 %v1603
        %vm1610 = vmor %vm1608, %vm1609
        %v1611 = vsel %vm1610, %v1603, %v1607
        %v1612 = vand.u32 2147483647, %v1357
        %vm1613 = vcmp.eq.f32.partialorder %v1612, 8.507059e+37
        %v1614 = vand.u32 %v1357, 2147483648
        %v1615 = vor.u32 1.1754944e-38, %v1614
        %v1616 = vsel %vm1613, %v1615, %v1611
        %v1617 = vmul.f32 1.0, %v1616
        %v1618 = vrcp.pop %v1358
        %v1619 = vmul.f32 %v1358, %v1618
        %v1620 = vsub.f32 1.0, %v1619
        %v1621 = vmul.f32 %v1618, %v1620
        %v1622 = vadd.f32 %v1618, %v1621
        %vm1623 = vweird.f32 %v1358
        %vm1624 = vweird.f32 %v1618
        %vm1625 = vmor %vm1623, %vm1624
        %v1626 = vsel %vm1625, %v1618, %v1622
        %v1627 = vand.u32 2147483647, %v1358
        %vm1628 = vcmp.eq.f32.partialorder %v1627, 8.507059e+37
        %v1629 = vand.u32 %v1358, 2147483648
        %v1630 = vor.u32 1.1754944e-38, %v1629
        %v1631 = vsel %vm1628, %v1630, %v1626
        %v1632 = vmul.f32 1.0, %v1631
        %v1633 = vrcp.pop %v1359
        %v1634 = vmul.f32 %v1359, %v1633
        %v1635 = vsub.f32 1.0, %v1634
        %v1636 = vmul.f32 %v1633, %v1635
        %v1637 = vadd.f32 %v1633, %v1636
        %vm1638 = vweird.f32 %v1359
        %vm1639 = vweird.f32 %v1633
        %vm1640 = vmor %vm1638, %vm1639
        %v1641 = vsel %vm1640, %v1633, %v1637
        %v1642 = vand.u32 2147483647, %v1359
        %vm1643 = vcmp.eq.f32.partialorder %v1642, 8.507059e+37
        %v1644 = vand.u32 %v1359, 2147483648
        %v1645 = vor.u32 1.1754944e-38, %v1644
        %v1646 = vsel %vm1643, %v1645, %v1641
        %v1647 = vmul.f32 1.0, %v1646
        %v1648 = vrcp.pop %v1360
        %v1649 = vmul.f32 %v1360, %v1648
        %v1650 = vsub.f32 1.0, %v1649
        %v1651 = vmul.f32 %v1648, %v1650
        %v1652 = vadd.f32 %v1648, %v1651
        %vm1653 = vweird.f32 %v1360
        %vm1654 = vweird.f32 %v1648
        %vm1655 = vmor %vm1653, %vm1654
        %v1656 = vsel %vm1655, %v1648, %v1652
        %v1657 = vand.u32 2147483647, %v1360
        %vm1658 = vcmp.eq.f32.partialorder %v1657, 8.507059e+37
        %v1659 = vand.u32 %v1360, 2147483648
        %v1660 = vor.u32 1.1754944e-38, %v1659
        %v1661 = vsel %vm1658, %v1660, %v1656
        %v1662 = vmul.f32 1.0, %v1661
        %v1663 = vrcp.pop %v1361
        %v1664 = vmul.f32 %v1361, %v1663
        %v1665 = vsub.f32 1.0, %v1664
        %v1666 = vmul.f32 %v1663, %v1665
        %v1667 = vadd.f32 %v1663, %v1666
        %vm1668 = vweird.f32 %v1361
        %vm1669 = vweird.f32 %v1663
        %vm1670 = vmor %vm1668, %vm1669
        %v1671 = vsel %vm1670, %v1663, %v1667
        %v1672 = vand.u32 2147483647, %v1361
        %vm1673 = vcmp.eq.f32.partialorder %v1672, 8.507059e+37
        %v1674 = vand.u32 %v1361, 2147483648
        %v1675 = vor.u32 1.1754944e-38, %v1674
        %v1676 = vsel %vm1673, %v1675, %v1671
        %v1677 = vmul.f32 1.0, %v1676
        %v1678 = vrcp.pop %v1362
        %v1679 = vmul.f32 %v1362, %v1678
        %v1680 = vsub.f32 1.0, %v1679
        %v1681 = vmul.f32 %v1678, %v1680
        %v1682 = vadd.f32 %v1678, %v1681
        %vm1683 = vweird.f32 %v1362
        %vm1684 = vweird.f32 %v1678
        %vm1685 = vmor %vm1683, %vm1684
        %v1686 = vsel %vm1685, %v1678, %v1682
        %v1687 = vand.u32 2147483647, %v1362
        %vm1688 = vcmp.eq.f32.partialorder %v1687, 8.507059e+37
        %v1689 = vand.u32 %v1362, 2147483648
        %v1690 = vor.u32 1.1754944e-38, %v1689
        %v1691 = vsel %vm1688, %v1690, %v1686
        %v1692 = vmul.f32 1.0, %v1691
        %v1693 = vrcp.pop %v1363
        %v1694 = vmul.f32 %v1363, %v1693
        %v1695 = vsub.f32 1.0, %v1694
        %v1696 = vmul.f32 %v1693, %v1695
        %v1697 = vadd.f32 %v1693, %v1696
        %vm1698 = vweird.f32 %v1363
        %vm1699 = vweird.f32 %v1693
        %vm1700 = vmor %vm1698, %vm1699
        %v1701 = vsel %vm1700, %v1693, %v1697
        %v1702 = vand.u32 2147483647, %v1363
        %vm1703 = vcmp.eq.f32.partialorder %v1702, 8.507059e+37
        %v1704 = vand.u32 %v1363, 2147483648
        %v1705 = vor.u32 1.1754944e-38, %v1704
        %v1706 = vsel %vm1703, %v1705, %v1701
        %v1707 = vmul.f32 1.0, %v1706
        %v1708 = vrcp.pop %v1364
        %v1709 = vmul.f32 %v1364, %v1708
        %v1710 = vsub.f32 1.0, %v1709
        %v1711 = vmul.f32 %v1708, %v1710
        %v1712 = vadd.f32 %v1708, %v1711
        %vm1713 = vweird.f32 %v1364
        %vm1714 = vweird.f32 %v1708
        %vm1715 = vmor %vm1713, %vm1714
        %v1716 = vsel %vm1715, %v1708, %v1712
        %v1717 = vand.u32 2147483647, %v1364
        %vm1718 = vcmp.eq.f32.partialorder %v1717, 8.507059e+37
        %v1719 = vand.u32 %v1364, 2147483648
        %v1720 = vor.u32 1.1754944e-38, %v1719
        %v1721 = vsel %vm1718, %v1720, %v1716
        %v1722 = vmul.f32 1.0, %v1721
        %v1723 = vrcp.pop %v1365
        %v1724 = vmul.f32 %v1365, %v1723
        %v1725 = vsub.f32 1.0, %v1724
        %v1726 = vmul.f32 %v1723, %v1725
        %v1727 = vadd.f32 %v1723, %v1726
        %vm1728 = vweird.f32 %v1365
        %vm1729 = vweird.f32 %v1723
        %vm1730 = vmor %vm1728, %vm1729
        %v1731 = vsel %vm1730, %v1723, %v1727
        %v1732 = vand.u32 2147483647, %v1365
        %vm1733 = vcmp.eq.f32.partialorder %v1732, 8.507059e+37
        %v1734 = vand.u32 %v1365, 2147483648
        %v1735 = vor.u32 1.1754944e-38, %v1734
        %v1736 = vsel %vm1733, %v1735, %v1731
        %v1737 = vmul.f32 1.0, %v1736
        %v1738 = vrcp.pop %v1366
        %v1739 = vmul.f32 %v1366, %v1738
        %v1740 = vsub.f32 1.0, %v1739
        %v1741 = vmul.f32 %v1738, %v1740
        %v1742 = vadd.f32 %v1738, %v1741
        %vm1743 = vweird.f32 %v1366
        %vm1744 = vweird.f32 %v1738
        %vm1745 = vmor %vm1743, %vm1744
        %v1746 = vsel %vm1745, %v1738, %v1742
        %v1747 = vand.u32 2147483647, %v1366
        %vm1748 = vcmp.eq.f32.partialorder %v1747, 8.507059e+37
        %v1749 = vand.u32 %v1366, 2147483648
        %v1750 = vor.u32 1.1754944e-38, %v1749
        %v1751 = vsel %vm1748, %v1750, %v1746
        %v1752 = vmul.f32 1.0, %v1751
        %v1753 = vrcp.pop %v1367
        %v1754 = vmul.f32 %v1367, %v1753
        %v1755 = vsub.f32 1.0, %v1754
        %v1756 = vmul.f32 %v1753, %v1755
        %v1757 = vadd.f32 %v1753, %v1756
        %vm1758 = vweird.f32 %v1367
        %vm1759 = vweird.f32 %v1753
        %vm1760 = vmor %vm1758, %vm1759
        %v1761 = vsel %vm1760, %v1753, %v1757
        %v1762 = vand.u32 2147483647, %v1367
        %vm1763 = vcmp.eq.f32.partialorder %v1762, 8.507059e+37
        %v1764 = vand.u32 %v1367, 2147483648
        %v1765 = vor.u32 1.1754944e-38, %v1764
        %v1766 = vsel %vm1763, %v1765, %v1761
        %v1767 = vmul.f32 1.0, %v1766
        %v1768 = vrcp.pop %v1368
        %v1769 = vmul.f32 %v1368, %v1768
        %v1770 = vsub.f32 1.0, %v1769
        %v1771 = vmul.f32 %v1768, %v1770
        %v1772 = vadd.f32 %v1768, %v1771
        %vm1773 = vweird.f32 %v1368
        %vm1774 = vweird.f32 %v1768
        %vm1775 = vmor %vm1773, %vm1774
        %v1776 = vsel %vm1775, %v1768, %v1772
        %v1777 = vand.u32 2147483647, %v1368
        %vm1778 = vcmp.eq.f32.partialorder %v1777, 8.507059e+37
        %v1779 = vand.u32 %v1368, 2147483648
        %v1780 = vor.u32 1.1754944e-38, %v1779
        %v1781 = vsel %vm1778, %v1780, %v1776
        %v1782 = vmul.f32 1.0, %v1781
        %v1783 = vrcp.pop %v1369
        %v1784 = vmul.f32 %v1369, %v1783
        %v1785 = vsub.f32 1.0, %v1784
        %v1786 = vmul.f32 %v1783, %v1785
        %v1787 = vadd.f32 %v1783, %v1786
        %vm1788 = vweird.f32 %v1369
        %vm1789 = vweird.f32 %v1783
        %vm1790 = vmor %vm1788, %vm1789
        %v1791 = vsel %vm1790, %v1783, %v1787
        %v1792 = vand.u32 2147483647, %v1369
        %vm1793 = vcmp.eq.f32.partialorder %v1792, 8.507059e+37
        %v1794 = vand.u32 %v1369, 2147483648
        %v1795 = vor.u32 1.1754944e-38, %v1794
        %v1796 = vsel %vm1793, %v1795, %v1791
        %v1797 = vmul.f32 1.0, %v1796
        %v1798 = vrcp.pop %v1370
        %v1799 = vmul.f32 %v1370, %v1798
        %v1800 = vsub.f32 1.0, %v1799
        %v1801 = vmul.f32 %v1798, %v1800
        %v1802 = vadd.f32 %v1798, %v1801
        %vm1803 = vweird.f32 %v1370
        %vm1804 = vweird.f32 %v1798
        %vm1805 = vmor %vm1803, %vm1804
        %v1806 = vsel %vm1805, %v1798, %v1802
        %v1807 = vand.u32 2147483647, %v1370
        %vm1808 = vcmp.eq.f32.partialorder %v1807, 8.507059e+37
        %v1809 = vand.u32 %v1370, 2147483648
        %v1810 = vor.u32 1.1754944e-38, %v1809
        %v1811 = vsel %vm1808, %v1810, %v1806
        %v1812 = vmul.f32 1.0, %v1811
        %v1813 = vrcp.pop %v1371
        %v1814 = vmul.f32 %v1371, %v1813
        %v1815 = vsub.f32 1.0, %v1814
        %v1816 = vmul.f32 %v1813, %v1815
        %v1817 = vadd.f32 %v1813, %v1816
        %vm1818 = vweird.f32 %v1371
        %vm1819 = vweird.f32 %v1813
        %vm1820 = vmor %vm1818, %vm1819
        %v1821 = vsel %vm1820, %v1813, %v1817
        %v1822 = vand.u32 2147483647, %v1371
        %vm1823 = vcmp.eq.f32.partialorder %v1822, 8.507059e+37
        %v1824 = vand.u32 %v1371, 2147483648
        %v1825 = vor.u32 1.1754944e-38, %v1824
        %v1826 = vsel %vm1823, %v1825, %v1821
        %v1827 = vmul.f32 1.0, %v1826
        %v1828 = vrcp.pop %v1372
        %v1829 = vmul.f32 %v1372, %v1828
        %v1830 = vsub.f32 1.0, %v1829
        %v1831 = vmul.f32 %v1828, %v1830
        %v1832 = vadd.f32 %v1828, %v1831
        %vm1833 = vweird.f32 %v1372
        %vm1834 = vweird.f32 %v1828
        %vm1835 = vmor %vm1833, %vm1834
        %v1836 = vsel %vm1835, %v1828, %v1832
        %v1837 = vand.u32 2147483647, %v1372
        %vm1838 = vcmp.eq.f32.partialorder %v1837, 8.507059e+37
        %v1839 = vand.u32 %v1372, 2147483648
        %v1840 = vor.u32 1.1754944e-38, %v1839
        %v1841 = vsel %vm1838, %v1840, %v1836
        %v1842 = vmul.f32 1.0, %v1841
        %v1843 = vrcp.pop %v1373
        %v1844 = vmul.f32 %v1373, %v1843
        %v1845 = vsub.f32 1.0, %v1844
        %v1846 = vmul.f32 %v1843, %v1845
        %v1847 = vadd.f32 %v1843, %v1846
        %vm1848 = vweird.f32 %v1373
        %vm1849 = vweird.f32 %v1843
        %vm1850 = vmor %vm1848, %vm1849
        %v1851 = vsel %vm1850, %v1843, %v1847
        %v1852 = vand.u32 2147483647, %v1373
        %vm1853 = vcmp.eq.f32.partialorder %v1852, 8.507059e+37
        %v1854 = vand.u32 %v1373, 2147483648
        %v1855 = vor.u32 1.1754944e-38, %v1854
        %v1856 = vsel %vm1853, %v1855, %v1851
        %v1857 = vmul.f32 1.0, %v1856
        %v1858 = vrcp.pop %v1374
        %v1859 = vmul.f32 %v1374, %v1858
        %v1860 = vsub.f32 1.0, %v1859
        %v1861 = vmul.f32 %v1858, %v1860
        %v1862 = vadd.f32 %v1858, %v1861
        %vm1863 = vweird.f32 %v1374
        %vm1864 = vweird.f32 %v1858
        %vm1865 = vmor %vm1863, %vm1864
        %v1866 = vsel %vm1865, %v1858, %v1862
        %v1867 = vand.u32 2147483647, %v1374
        %vm1868 = vcmp.eq.f32.partialorder %v1867, 8.507059e+37
        %v1869 = vand.u32 %v1374, 2147483648
        %v1870 = vor.u32 1.1754944e-38, %v1869
        %v1871 = vsel %vm1868, %v1870, %v1866
        %v1872 = vmul.f32 1.0, %v1871
        %v1873 = vrcp.pop %v1375
        %v1874 = vmul.f32 %v1375, %v1873
        %v1875 = vsub.f32 1.0, %v1874
        %v1876 = vmul.f32 %v1873, %v1875
        %v1877 = vadd.f32 %v1873, %v1876
        %vm1878 = vweird.f32 %v1375
        %vm1879 = vweird.f32 %v1873
        %vm1880 = vmor %vm1878, %vm1879
        %v1881 = vsel %vm1880, %v1873, %v1877
        %v1882 = vand.u32 2147483647, %v1375
        %vm1883 = vcmp.eq.f32.partialorder %v1882, 8.507059e+37
        %v1884 = vand.u32 %v1375, 2147483648
        %v1885 = vor.u32 1.1754944e-38, %v1884
        %v1886 = vsel %vm1883, %v1885, %v1881
        %v1887 = vmul.f32 1.0, %v1886
        %v1888 = vrcp.pop %v1376
        %v1889 = vmul.f32 %v1376, %v1888
        %v1890 = vsub.f32 1.0, %v1889
        %v1891 = vmul.f32 %v1888, %v1890
        %v1892 = vadd.f32 %v1888, %v1891
        %vm1893 = vweird.f32 %v1376
        %vm1894 = vweird.f32 %v1888
        %vm1895 = vmor %vm1893, %vm1894
        %v1896 = vsel %vm1895, %v1888, %v1892
        %v1897 = vand.u32 2147483647, %v1376
        %vm1898 = vcmp.eq.f32.partialorder %v1897, 8.507059e+37
        %v1899 = vand.u32 %v1376, 2147483648
        %v1900 = vor.u32 1.1754944e-38, %v1899
        %v1901 = vsel %vm1898, %v1900, %v1896
        %v1902 = vmul.f32 1.0, %v1901
        %v1903 = vrcp.pop %v1377
        %v1904 = vmul.f32 %v1377, %v1903
        %v1905 = vsub.f32 1.0, %v1904
        %v1906 = vmul.f32 %v1903, %v1905
        %v1907 = vadd.f32 %v1903, %v1906
        %vm1908 = vweird.f32 %v1377
        %vm1909 = vweird.f32 %v1903
        %vm1910 = vmor %vm1908, %vm1909
        %v1911 = vsel %vm1910, %v1903, %v1907
        %v1912 = vand.u32 2147483647, %v1377
        %vm1913 = vcmp.eq.f32.partialorder %v1912, 8.507059e+37
        %v1914 = vand.u32 %v1377, 2147483648
        %v1915 = vor.u32 1.1754944e-38, %v1914
        %v1916 = vsel %vm1913, %v1915, %v1911
        %v1917 = vmul.f32 1.0, %v1916
        %v1918 = vrcp.pop %v1378
        %v1919 = vmul.f32 %v1378, %v1918
        %v1920 = vsub.f32 1.0, %v1919
        %v1921 = vmul.f32 %v1918, %v1920
        %v1922 = vadd.f32 %v1918, %v1921
        %vm1923 = vweird.f32 %v1378
        %vm1924 = vweird.f32 %v1918
        %vm1925 = vmor %vm1923, %vm1924
        %v1926 = vsel %vm1925, %v1918, %v1922
        %v1927 = vand.u32 2147483647, %v1378
        %vm1928 = vcmp.eq.f32.partialorder %v1927, 8.507059e+37
        %v1929 = vand.u32 %v1378, 2147483648
        %v1930 = vor.u32 1.1754944e-38, %v1929
        %v1931 = vsel %vm1928, %v1930, %v1926
        %v1932 = vmul.f32 1.0, %v1931
        %v1933 = vrcp.pop %v1379
        %v1934 = vmul.f32 %v1379, %v1933
        %v1935 = vsub.f32 1.0, %v1934
        %v1936 = vmul.f32 %v1933, %v1935
        %v1937 = vadd.f32 %v1933, %v1936
        %vm1938 = vweird.f32 %v1379
        %vm1939 = vweird.f32 %v1933
        %vm1940 = vmor %vm1938, %vm1939
        %v1941 = vsel %vm1940, %v1933, %v1937
        %v1942 = vand.u32 2147483647, %v1379
        %vm1943 = vcmp.eq.f32.partialorder %v1942, 8.507059e+37
        %v1944 = vand.u32 %v1379, 2147483648
        %v1945 = vor.u32 1.1754944e-38, %v1944
        %v1946 = vsel %vm1943, %v1945, %v1941
        %v1947 = vmul.f32 1.0, %v1946
        %v1948 = vrcp.pop %v1380
        %v1949 = vmul.f32 %v1380, %v1948
        %v1950 = vsub.f32 1.0, %v1949
        %v1951 = vmul.f32 %v1948, %v1950
        %v1952 = vadd.f32 %v1948, %v1951
        %vm1953 = vweird.f32 %v1380
        %vm1954 = vweird.f32 %v1948
        %vm1955 = vmor %vm1953, %vm1954
        %v1956 = vsel %vm1955, %v1948, %v1952
        %v1957 = vand.u32 2147483647, %v1380
        %vm1958 = vcmp.eq.f32.partialorder %v1957, 8.507059e+37
        %v1959 = vand.u32 %v1380, 2147483648
        %v1960 = vor.u32 1.1754944e-38, %v1959
        %v1961 = vsel %vm1958, %v1960, %v1956
        %v1962 = vmul.f32 1.0, %v1961
        %v1963 = vrcp.pop %v1381
        %v1964 = vmul.f32 %v1381, %v1963
        %v1965 = vsub.f32 1.0, %v1964
        %v1966 = vmul.f32 %v1963, %v1965
        %v1967 = vadd.f32 %v1963, %v1966
        %vm1968 = vweird.f32 %v1381
        %vm1969 = vweird.f32 %v1963
        %vm1970 = vmor %vm1968, %vm1969
        %v1971 = vsel %vm1970, %v1963, %v1967
        %v1972 = vand.u32 2147483647, %v1381
        %vm1973 = vcmp.eq.f32.partialorder %v1972, 8.507059e+37
        %v1974 = vand.u32 %v1381, 2147483648
        %v1975 = vor.u32 1.1754944e-38, %v1974
        %v1976 = vsel %vm1973, %v1975, %v1971
        %v1977 = vmul.f32 1.0, %v1976
        %v1978 = vrcp.pop %v1382
        %v1979 = vmul.f32 %v1382, %v1978
        %v1980 = vsub.f32 1.0, %v1979
        %v1981 = vmul.f32 %v1978, %v1980
        %v1982 = vadd.f32 %v1978, %v1981
        %vm1983 = vweird.f32 %v1382
        %vm1984 = vweird.f32 %v1978
        %vm1985 = vmor %vm1983, %vm1984
        %v1986 = vsel %vm1985, %v1978, %v1982
        %v1987 = vand.u32 2147483647, %v1382
        %vm1988 = vcmp.eq.f32.partialorder %v1987, 8.507059e+37
        %v1989 = vand.u32 %v1382, 2147483648
        %v1990 = vor.u32 1.1754944e-38, %v1989
        %v1991 = vsel %vm1988, %v1990, %v1986
        %v1992 = vmul.f32 1.0, %v1991
        %v1993 = vrcp.pop %v1383
        %v1994 = vmul.f32 %v1383, %v1993
        %v1995 = vsub.f32 1.0, %v1994
        %v1996 = vmul.f32 %v1993, %v1995
        %v1997 = vadd.f32 %v1993, %v1996
        %vm1998 = vweird.f32 %v1383
        %vm1999 = vweird.f32 %v1993
        %vm2000 = vmor %vm1998, %vm1999
        %v2001 = vsel %vm2000, %v1993, %v1997
        %v2002 = vand.u32 2147483647, %v1383
        %vm2003 = vcmp.eq.f32.partialorder %v2002, 8.507059e+37
        %v2004 = vand.u32 %v1383, 2147483648
        %v2005 = vor.u32 1.1754944e-38, %v2004
        %v2006 = vsel %vm2003, %v2005, %v2001
        %v2007 = vmul.f32 1.0, %v2006
        %v2008 = vrcp.pop %v1384
        %v2009 = vmul.f32 %v1384, %v2008
        %v2010 = vsub.f32 1.0, %v2009
        %v2011 = vmul.f32 %v2008, %v2010
        %v2012 = vadd.f32 %v2008, %v2011
        %vm2013 = vweird.f32 %v1384
        %vm2014 = vweird.f32 %v2008
        %vm2015 = vmor %vm2013, %vm2014
        %v2016 = vsel %vm2015, %v2008, %v2012
        %v2017 = vand.u32 2147483647, %v1384
        %vm2018 = vcmp.eq.f32.partialorder %v2017, 8.507059e+37
        %v2019 = vand.u32 %v1384, 2147483648
        %v2020 = vor.u32 1.1754944e-38, %v2019
        %v2021 = vsel %vm2018, %v2020, %v2016
        %v2022 = vmul.f32 1.0, %v2021
        %v2023 = vrcp.pop %v1385
        %v2024 = vmul.f32 %v1385, %v2023
        %v2025 = vsub.f32 1.0, %v2024
        %v2026 = vmul.f32 %v2023, %v2025
        %v2027 = vadd.f32 %v2023, %v2026
        %vm2028 = vweird.f32 %v1385
        %vm2029 = vweird.f32 %v2023
        %vm2030 = vmor %vm2028, %vm2029
        %v2031 = vsel %vm2030, %v2023, %v2027
        %v2032 = vand.u32 2147483647, %v1385
        %vm2033 = vcmp.eq.f32.partialorder %v2032, 8.507059e+37
        %v2034 = vand.u32 %v1385, 2147483648
        %v2035 = vor.u32 1.1754944e-38, %v2034
        %v2036 = vsel %vm2033, %v2035, %v2031
        %v2037 = vmul.f32 1.0, %v2036
        %v2038 = vrcp.pop %v1386
        %v2039 = vmul.f32 %v1386, %v2038
        %v2040 = vsub.f32 1.0, %v2039
        %v2041 = vmul.f32 %v2038, %v2040
        %v2042 = vadd.f32 %v2038, %v2041
        %vm2043 = vweird.f32 %v1386
        %vm2044 = vweird.f32 %v2038
        %vm2045 = vmor %vm2043, %vm2044
        %v2046 = vsel %vm2045, %v2038, %v2042
        %v2047 = vand.u32 2147483647, %v1386
        %vm2048 = vcmp.eq.f32.partialorder %v2047, 8.507059e+37
        %v2049 = vand.u32 %v1386, 2147483648
        %v2050 = vor.u32 1.1754944e-38, %v2049
        %v2051 = vsel %vm2048, %v2050, %v2046
        %v2052 = vmul.f32 1.0, %v2051
        %v2053 = vrcp.pop %v1387
        %v2054 = vmul.f32 %v1387, %v2053
        %v2055 = vsub.f32 1.0, %v2054
        %v2056 = vmul.f32 %v2053, %v2055
        %v2057 = vadd.f32 %v2053, %v2056
        %vm2058 = vweird.f32 %v1387
        %vm2059 = vweird.f32 %v2053
        %vm2060 = vmor %vm2058, %vm2059
        %v2061 = vsel %vm2060, %v2053, %v2057
        %v2062 = vand.u32 2147483647, %v1387
        %vm2063 = vcmp.eq.f32.partialorder %v2062, 8.507059e+37
        %v2064 = vand.u32 %v1387, 2147483648
        %v2065 = vor.u32 1.1754944e-38, %v2064
        %v2066 = vsel %vm2063, %v2065, %v2061
        %v2067 = vmul.f32 1.0, %v2066
        %v2068 = vrcp.pop %v1388
        %v2069 = vmul.f32 %v1388, %v2068
        %v2070 = vsub.f32 1.0, %v2069
        %v2071 = vmul.f32 %v2068, %v2070
        %v2072 = vadd.f32 %v2068, %v2071
        %vm2073 = vweird.f32 %v1388
        %vm2074 = vweird.f32 %v2068
        %vm2075 = vmor %vm2073, %vm2074
        %v2076 = vsel %vm2075, %v2068, %v2072
        %v2077 = vand.u32 2147483647, %v1388
        %vm2078 = vcmp.eq.f32.partialorder %v2077, 8.507059e+37
        %v2079 = vand.u32 %v1388, 2147483648
        %v2080 = vor.u32 1.1754944e-38, %v2079
        %v2081 = vsel %vm2078, %v2080, %v2076
        %v2082 = vmul.f32 1.0, %v2081
        %v2083 = vrcp.pop %v1389
        %v2084 = vmul.f32 %v1389, %v2083
        %v2085 = vsub.f32 1.0, %v2084
        %v2086 = vmul.f32 %v2083, %v2085
        %v2087 = vadd.f32 %v2083, %v2086
        %vm2088 = vweird.f32 %v1389
        %vm2089 = vweird.f32 %v2083
        %vm2090 = vmor %vm2088, %vm2089
        %v2091 = vsel %vm2090, %v2083, %v2087
        %v2092 = vand.u32 2147483647, %v1389
        %vm2093 = vcmp.eq.f32.partialorder %v2092, 8.507059e+37
        %v2094 = vand.u32 %v1389, 2147483648
        %v2095 = vor.u32 1.1754944e-38, %v2094
        %v2096 = vsel %vm2093, %v2095, %v2091
        %v2097 = vmul.f32 1.0, %v2096
        %v2098 = vrcp.pop %v1390
        %v2099 = vmul.f32 %v1390, %v2098
        %v2100 = vsub.f32 1.0, %v2099
        %v2101 = vmul.f32 %v2098, %v2100
        %v2102 = vadd.f32 %v2098, %v2101
        %vm2103 = vweird.f32 %v1390
        %vm2104 = vweird.f32 %v2098
        %vm2105 = vmor %vm2103, %vm2104
        %v2106 = vsel %vm2105, %v2098, %v2102
        %v2107 = vand.u32 2147483647, %v1390
        %vm2108 = vcmp.eq.f32.partialorder %v2107, 8.507059e+37
        %v2109 = vand.u32 %v1390, 2147483648
        %v2110 = vor.u32 1.1754944e-38, %v2109
        %v2111 = vsel %vm2108, %v2110, %v2106
        %v2112 = vmul.f32 1.0, %v2111
        %v2113 = vrcp.pop %v1391
        %v2114 = vmul.f32 %v1391, %v2113
        %v2115 = vsub.f32 1.0, %v2114
        %v2116 = vmul.f32 %v2113, %v2115
        %v2117 = vadd.f32 %v2113, %v2116
        %vm2118 = vweird.f32 %v1391
        %vm2119 = vweird.f32 %v2113
        %vm2120 = vmor %vm2118, %vm2119
        %v2121 = vsel %vm2120, %v2113, %v2117
        %v2122 = vand.u32 2147483647, %v1391
        %vm2123 = vcmp.eq.f32.partialorder %v2122, 8.507059e+37
        %v2124 = vand.u32 %v1391, 2147483648
        %v2125 = vor.u32 1.1754944e-38, %v2124
        %v2126 = vsel %vm2123, %v2125, %v2121
        %v2127 = vmul.f32 1.0, %v2126
        %v2128 = vrcp.pop %v1392
        %v2129 = vmul.f32 %v1392, %v2128
        %v2130 = vsub.f32 1.0, %v2129
        %v2131 = vmul.f32 %v2128, %v2130
        %v2132 = vadd.f32 %v2128, %v2131
        %vm2133 = vweird.f32 %v1392
        %vm2134 = vweird.f32 %v2128
        %vm2135 = vmor %vm2133, %vm2134
        %v2136 = vsel %vm2135, %v2128, %v2132
        %v2137 = vand.u32 2147483647, %v1392
        %vm2138 = vcmp.eq.f32.partialorder %v2137, 8.507059e+37
        %v2139 = vand.u32 %v1392, 2147483648
        %v2140 = vor.u32 1.1754944e-38, %v2139
        %v2141 = vsel %vm2138, %v2140, %v2136
        %v2142 = vmul.f32 1.0, %v2141
        %v2143 = vrcp.pop %v1393
        %v2144 = vmul.f32 %v1393, %v2143
        %v2145 = vsub.f32 1.0, %v2144
        %v2146 = vmul.f32 %v2143, %v2145
        %v2147 = vadd.f32 %v2143, %v2146
        %vm2148 = vweird.f32 %v1393
        %vm2149 = vweird.f32 %v2143
        %vm2150 = vmor %vm2148, %vm2149
        %v2151 = vsel %vm2150, %v2143, %v2147
        %v2152 = vand.u32 2147483647, %v1393
        %vm2153 = vcmp.eq.f32.partialorder %v2152, 8.507059e+37
        %v2154 = vand.u32 %v1393, 2147483648
        %v2155 = vor.u32 1.1754944e-38, %v2154
        %v2156 = vsel %vm2153, %v2155, %v2151
        %v2157 = vmul.f32 1.0, %v2156
        %v2158 = vrcp.pop %v1394
        %v2159 = vmul.f32 %v1394, %v2158
        %v2160 = vsub.f32 1.0, %v2159
        %v2161 = vmul.f32 %v2158, %v2160
        %v2162 = vadd.f32 %v2158, %v2161
        %vm2163 = vweird.f32 %v1394
        %vm2164 = vweird.f32 %v2158
        %vm2165 = vmor %vm2163, %vm2164
        %v2166 = vsel %vm2165, %v2158, %v2162
        %v2167 = vand.u32 2147483647, %v1394
        %vm2168 = vcmp.eq.f32.partialorder %v2167, 8.507059e+37
        %v2169 = vand.u32 %v1394, 2147483648
        %v2170 = vor.u32 1.1754944e-38, %v2169
        %v2171 = vsel %vm2168, %v2170, %v2166
        %v2172 = vmul.f32 1.0, %v2171
        %v2173 = vrcp.pop %v1395
        %v2174 = vmul.f32 %v1395, %v2173
        %v2175 = vsub.f32 1.0, %v2174
        %v2176 = vmul.f32 %v2173, %v2175
        %v2177 = vadd.f32 %v2173, %v2176
        %vm2178 = vweird.f32 %v1395
        %vm2179 = vweird.f32 %v2173
        %vm2180 = vmor %vm2178, %vm2179
        %v2181 = vsel %vm2180, %v2173, %v2177
        %v2182 = vand.u32 2147483647, %v1395
        %vm2183 = vcmp.eq.f32.partialorder %v2182, 8.507059e+37
        %v2184 = vand.u32 %v1395, 2147483648
        %v2185 = vor.u32 1.1754944e-38, %v2184
        %v2186 = vsel %vm2183, %v2185, %v2181
        %v2187 = vmul.f32 1.0, %v2186
        %v2188 = vrcp.pop %v1396
        %v2189 = vmul.f32 %v1396, %v2188
        %v2190 = vsub.f32 1.0, %v2189
        %v2191 = vmul.f32 %v2188, %v2190
        %v2192 = vadd.f32 %v2188, %v2191
        %vm2193 = vweird.f32 %v1396
        %vm2194 = vweird.f32 %v2188
        %vm2195 = vmor %vm2193, %vm2194
        %v2196 = vsel %vm2195, %v2188, %v2192
        %v2197 = vand.u32 2147483647, %v1396
        %vm2198 = vcmp.eq.f32.partialorder %v2197, 8.507059e+37
        %v2199 = vand.u32 %v1396, 2147483648
        %v2200 = vor.u32 1.1754944e-38, %v2199
        %v2201 = vsel %vm2198, %v2200, %v2196
        %v2202 = vmul.f32 1.0, %v2201
        %v2203 = vrcp.pop %v1397
        %v2204 = vmul.f32 %v1397, %v2203
        %v2205 = vsub.f32 1.0, %v2204
        %v2206 = vmul.f32 %v2203, %v2205
        %v2207 = vadd.f32 %v2203, %v2206
        %vm2208 = vweird.f32 %v1397
        %vm2209 = vweird.f32 %v2203
        %vm2210 = vmor %vm2208, %vm2209
        %v2211 = vsel %vm2210, %v2203, %v2207
        %v2212 = vand.u32 2147483647, %v1397
        %vm2213 = vcmp.eq.f32.partialorder %v2212, 8.507059e+37
        %v2214 = vand.u32 %v1397, 2147483648
        %v2215 = vor.u32 1.1754944e-38, %v2214
        %v2216 = vsel %vm2213, %v2215, %v2211
        %v2217 = vmul.f32 1.0, %v2216
        %v2218 = vrcp.pop %v1398
        %v2219 = vmul.f32 %v1398, %v2218
        %v2220 = vsub.f32 1.0, %v2219
        %v2221 = vmul.f32 %v2218, %v2220
        %v2222 = vadd.f32 %v2218, %v2221
        %vm2223 = vweird.f32 %v1398
        %vm2224 = vweird.f32 %v2218
        %vm2225 = vmor %vm2223, %vm2224
        %v2226 = vsel %vm2225, %v2218, %v2222
        %v2227 = vand.u32 2147483647, %v1398
        %vm2228 = vcmp.eq.f32.partialorder %v2227, 8.507059e+37
        %v2229 = vand.u32 %v1398, 2147483648
        %v2230 = vor.u32 1.1754944e-38, %v2229
        %v2231 = vsel %vm2228, %v2230, %v2226
        %v2232 = vmul.f32 1.0, %v2231
        %v2233 = vrcp.pop %v1399
        %v2234 = vmul.f32 %v1399, %v2233
        %v2235 = vsub.f32 1.0, %v2234
        %v2236 = vmul.f32 %v2233, %v2235
        %v2237 = vadd.f32 %v2233, %v2236
        %vm2238 = vweird.f32 %v1399
        %vm2239 = vweird.f32 %v2233
        %vm2240 = vmor %vm2238, %vm2239
        %v2241 = vsel %vm2240, %v2233, %v2237
        %v2242 = vand.u32 2147483647, %v1399
        %vm2243 = vcmp.eq.f32.partialorder %v2242, 8.507059e+37
        %v2244 = vand.u32 %v1399, 2147483648
        %v2245 = vor.u32 1.1754944e-38, %v2244
        %v2246 = vsel %vm2243, %v2245, %v2241
        %v2247 = vmul.f32 1.0, %v2246
        %v2248 = vrcp.pop %v1400
        %v2249 = vmul.f32 %v1400, %v2248
        %v2250 = vsub.f32 1.0, %v2249
        %v2251 = vmul.f32 %v2248, %v2250
        %v2252 = vadd.f32 %v2248, %v2251
        %vm2253 = vweird.f32 %v1400
        %vm2254 = vweird.f32 %v2248
        %vm2255 = vmor %vm2253, %vm2254
        %v2256 = vsel %vm2255, %v2248, %v2252
        %v2257 = vand.u32 2147483647, %v1400
        %vm2258 = vcmp.eq.f32.partialorder %v2257, 8.507059e+37
        %v2259 = vand.u32 %v1400, 2147483648
        %v2260 = vor.u32 1.1754944e-38, %v2259
        %v2261 = vsel %vm2258, %v2260, %v2256
        %v2262 = vmul.f32 1.0, %v2261
        %v2263 = vrcp.pop %v1401
        %v2264 = vmul.f32 %v1401, %v2263
        %v2265 = vsub.f32 1.0, %v2264
        %v2266 = vmul.f32 %v2263, %v2265
        %v2267 = vadd.f32 %v2263, %v2266
        %vm2268 = vweird.f32 %v1401
        %vm2269 = vweird.f32 %v2263
        %vm2270 = vmor %vm2268, %vm2269
        %v2271 = vsel %vm2270, %v2263, %v2267
        %v2272 = vand.u32 2147483647, %v1401
        %vm2273 = vcmp.eq.f32.partialorder %v2272, 8.507059e+37
        %v2274 = vand.u32 %v1401, 2147483648
        %v2275 = vor.u32 1.1754944e-38, %v2274
        %v2276 = vsel %vm2273, %v2275, %v2271
        %v2277 = vmul.f32 1.0, %v2276
        %v2278 = vrcp.pop %v1402
        %v2279 = vmul.f32 %v1402, %v2278
        %v2280 = vsub.f32 1.0, %v2279
        %v2281 = vmul.f32 %v2278, %v2280
        %v2282 = vadd.f32 %v2278, %v2281
        %vm2283 = vweird.f32 %v1402
        %vm2284 = vweird.f32 %v2278
        %vm2285 = vmor %vm2283, %vm2284
        %v2286 = vsel %vm2285, %v2278, %v2282
        %v2287 = vand.u32 2147483647, %v1402
        %vm2288 = vcmp.eq.f32.partialorder %v2287, 8.507059e+37
        %v2289 = vand.u32 %v1402, 2147483648
        %v2290 = vor.u32 1.1754944e-38, %v2289
        %v2291 = vsel %vm2288, %v2290, %v2286
        %v2292 = vmul.f32 1.0, %v2291
        %v2293 = vrcp.pop %v1403
        %v2294 = vmul.f32 %v1403, %v2293
        %v2295 = vsub.f32 1.0, %v2294
        %v2296 = vmul.f32 %v2293, %v2295
        %v2297 = vadd.f32 %v2293, %v2296
        %vm2298 = vweird.f32 %v1403
        %vm2299 = vweird.f32 %v2293
        %vm2300 = vmor %vm2298, %vm2299
        %v2301 = vsel %vm2300, %v2293, %v2297
        %v2302 = vand.u32 2147483647, %v1403
        %vm2303 = vcmp.eq.f32.partialorder %v2302, 8.507059e+37
        %v2304 = vand.u32 %v1403, 2147483648
        %v2305 = vor.u32 1.1754944e-38, %v2304
        %v2306 = vsel %vm2303, %v2305, %v2301
        %v2307 = vmul.f32 1.0, %v2306
        %v2308 = vrcp.pop %v1404
        %v2309 = vmul.f32 %v1404, %v2308
        %v2310 = vsub.f32 1.0, %v2309
        %v2311 = vmul.f32 %v2308, %v2310
        %v2312 = vadd.f32 %v2308, %v2311
        %vm2313 = vweird.f32 %v1404
        %vm2314 = vweird.f32 %v2308
        %vm2315 = vmor %vm2313, %vm2314
        %v2316 = vsel %vm2315, %v2308, %v2312
        %v2317 = vand.u32 2147483647, %v1404
        %vm2318 = vcmp.eq.f32.partialorder %v2317, 8.507059e+37
        %v2319 = vand.u32 %v1404, 2147483648
        %v2320 = vor.u32 1.1754944e-38, %v2319
        %v2321 = vsel %vm2318, %v2320, %v2316
        %v2322 = vmul.f32 1.0, %v2321
        %v2323 = vrcp.pop %v1405
        %v2324 = vmul.f32 %v1405, %v2323
        %v2325 = vsub.f32 1.0, %v2324
        %v2326 = vmul.f32 %v2323, %v2325
        %v2327 = vadd.f32 %v2323, %v2326
        %vm2328 = vweird.f32 %v1405
        %vm2329 = vweird.f32 %v2323
        %vm2330 = vmor %vm2328, %vm2329
        %v2331 = vsel %vm2330, %v2323, %v2327
        %v2332 = vand.u32 2147483647, %v1405
        %vm2333 = vcmp.eq.f32.partialorder %v2332, 8.507059e+37
        %v2334 = vand.u32 %v1405, 2147483648
        %v2335 = vor.u32 1.1754944e-38, %v2334
        %v2336 = vsel %vm2333, %v2335, %v2331
        %v2337 = vmul.f32 1.0, %v2336
        %v2338 = vrcp.pop %v1406
        %v2339 = vmul.f32 %v1406, %v2338
        %v2340 = vsub.f32 1.0, %v2339
        %v2341 = vmul.f32 %v2338, %v2340
        %v2342 = vadd.f32 %v2338, %v2341
        %vm2343 = vweird.f32 %v1406
        %vm2344 = vweird.f32 %v2338
        %vm2345 = vmor %vm2343, %vm2344
        %v2346 = vsel %vm2345, %v2338, %v2342
        %v2347 = vand.u32 2147483647, %v1406
        %vm2348 = vcmp.eq.f32.partialorder %v2347, 8.507059e+37
        %v2349 = vand.u32 %v1406, 2147483648
        %v2350 = vor.u32 1.1754944e-38, %v2349
        %v2351 = vsel %vm2348, %v2350, %v2346
        %v2352 = vmul.f32 1.0, %v2351
        %v2353 = vrcp.pop %v1407
        %v2354 = vmul.f32 %v1407, %v2353
        %v2355 = vsub.f32 1.0, %v2354
        %v2356 = vmul.f32 %v2353, %v2355
        %v2357 = vadd.f32 %v2353, %v2356
        %vm2358 = vweird.f32 %v1407
        %vm2359 = vweird.f32 %v2353
        %vm2360 = vmor %vm2358, %vm2359
        %v2361 = vsel %vm2360, %v2353, %v2357
        %v2362 = vand.u32 2147483647, %v1407
        %vm2363 = vcmp.eq.f32.partialorder %v2362, 8.507059e+37
        %v2364 = vand.u32 %v1407, 2147483648
        %v2365 = vor.u32 1.1754944e-38, %v2364
        %v2366 = vsel %vm2363, %v2365, %v2361
        %v2367 = vmul.f32 1.0, %v2366
        %v2368 = vmul.f32 %v966, %v1422
        %v2369 = vmul.f32 %v1015, %v1437
        %v2370 = vmul.f32 %v1064, %v1452
        %v2371 = vmul.f32 %v1113, %v1467
        %v2372 = vmul.f32 %v968, %v1482
        %v2373 = vmul.f32 %v1017, %v1497
        %v2374 = vmul.f32 %v1066, %v1512
        %v2375 = vmul.f32 %v1115, %v1527
        %v2376 = vmul.f32 %v971, %v1542
        %v2377 = vmul.f32 %v1020, %v1557
        %v2378 = vmul.f32 %v1069, %v1572
        %v2379 = vmul.f32 %v1118, %v1587
        %v2380 = vmul.f32 %v973, %v1602
        %v2381 = vmul.f32 %v1022, %v1617
        %v2382 = vmul.f32 %v1071, %v1632
        %v2383 = vmul.f32 %v1120, %v1647
        %v2384 = vmul.f32 %v976, %v1662
        %v2385 = vmul.f32 %v1025, %v1677
        %v2386 = vmul.f32 %v1074, %v1692
        %v2387 = vmul.f32 %v1123, %v1707
        %v2388 = vmul.f32 %v978, %v1722
        %v2389 = vmul.f32 %v1027, %v1737
        %v2390 = vmul.f32 %v1076, %v1752
        %v2391 = vmul.f32 %v1125, %v1767
        %v2392 = vmul.f32 %v981, %v1782
        %v2393 = vmul.f32 %v1030, %v1797
        %v2394 = vmul.f32 %v1079, %v1812
        %v2395 = vmul.f32 %v1128, %v1827
        %v2396 = vmul.f32 %v983, %v1842
        %v2397 = vmul.f32 %v1032, %v1857
        %v2398 = vmul.f32 %v1081, %v1872
        %v2399 = vmul.f32 %v1130, %v1887
        %v2400 = vmul.f32 %v986, %v1902
        %v2401 = vmul.f32 %v1035, %v1917
        %v2402 = vmul.f32 %v1084, %v1932
        %v2403 = vmul.f32 %v1133, %v1947
        %v2404 = vmul.f32 %v988, %v1962
        %v2405 = vmul.f32 %v1037, %v1977
        %v2406 = vmul.f32 %v1086, %v1992
        %v2407 = vmul.f32 %v1135, %v2007
        %v2408 = vmul.f32 %v991, %v2022
        %v2409 = vmul.f32 %v1040, %v2037
        %v2410 = vmul.f32 %v1089, %v2052
        %v2411 = vmul.f32 %v1138, %v2067
        %v2412 = vmul.f32 %v993, %v2082
        %v2413 = vmul.f32 %v1042, %v2097
        %v2414 = vmul.f32 %v1091, %v2112
        %v2415 = vmul.f32 %v1140, %v2127
        %v2416 = vmul.f32 %v996, %v2142
        %v2417 = vmul.f32 %v1045, %v2157
        %v2418 = vmul.f32 %v1094, %v2172
        %v2419 = vmul.f32 %v1143, %v2187
        %v2420 = vmul.f32 %v998, %v2202
        %v2421 = vmul.f32 %v1047, %v2217
        %v2422 = vmul.f32 %v1096, %v2232
        %v2423 = vmul.f32 %v1145, %v2247
        %v2424 = vmul.f32 %v1001, %v2262
        %v2425 = vmul.f32 %v1050, %v2277
        %v2426 = vmul.f32 %v1099, %v2292
        %v2427 = vmul.f32 %v1148, %v2307
        %v2428 = vmul.f32 %v1003, %v2322
        %v2429 = vmul.f32 %v1052, %v2337
        %v2430 = vmul.f32 %v1101, %v2352
        %v2431 = vmul.f32 %v1150, %v2367
        %v2432 = vpack.c.bf16 %v2372, %v2368
        %v2433 = vpack.c.bf16 %v2373, %v2369
        %v2434 = vpack.c.bf16 %v2374, %v2370
        %v2435 = vpack.c.bf16 %v2375, %v2371
        %v2436 = vpack.c.bf16 %v2380, %v2376
        %v2437 = vpack.c.bf16 %v2381, %v2377
        %v2438 = vpack.c.bf16 %v2382, %v2378
        %v2439 = vpack.c.bf16 %v2383, %v2379
        %v2440 = vpack.c.bf16 %v2388, %v2384
        %v2441 = vpack.c.bf16 %v2389, %v2385
        %v2442 = vpack.c.bf16 %v2390, %v2386
        %v2443 = vpack.c.bf16 %v2391, %v2387
        %v2444 = vpack.c.bf16 %v2396, %v2392
        %v2445 = vpack.c.bf16 %v2397, %v2393
        %v2446 = vpack.c.bf16 %v2398, %v2394
        %v2447 = vpack.c.bf16 %v2399, %v2395
        %v2448 = vpack.c.bf16 %v2404, %v2400
        %v2449 = vpack.c.bf16 %v2405, %v2401
        %v2450 = vpack.c.bf16 %v2406, %v2402
        %v2451 = vpack.c.bf16 %v2407, %v2403
        %v2452 = vpack.c.bf16 %v2412, %v2408
        %v2453 = vpack.c.bf16 %v2413, %v2409
        %v2454 = vpack.c.bf16 %v2414, %v2410
        %v2455 = vpack.c.bf16 %v2415, %v2411
        %v2456 = vpack.c.bf16 %v2420, %v2416
        %v2457 = vpack.c.bf16 %v2421, %v2417
        %v2458 = vpack.c.bf16 %v2422, %v2418
        %v2459 = vpack.c.bf16 %v2423, %v2419
        %v2460 = vpack.c.bf16 %v2428, %v2424
        %v2461 = vpack.c.bf16 %v2429, %v2425
        %v2462 = vpack.c.bf16 %v2430, %v2426
        %v2463 = vpack.c.bf16 %v2431, %v2427
        %v2464 = vld [vmem:[#allocation10] sm:$0xf]
        %v2465 = vld [vmem:[#allocation10 + $0x4] sm:$0xf]
        %v2466 = vld [vmem:[#allocation10 + $0x8] sm:$0xf]
        %v2467 = vld [vmem:[#allocation10 + $0xc] sm:$0xf]
        %v2468 = vld [vmem:[#allocation10 + $0x10] sm:$0xf]
        %v2469 = vld [vmem:[#allocation10 + $0x14] sm:$0xf]
        %v2470 = vld [vmem:[#allocation10 + $0x18] sm:$0xf]
        %v2471 = vld [vmem:[#allocation10 + $0x1c] sm:$0xf]
        %v2472 = vld [vmem:[#allocation10 + $0x20] sm:$0xf]
        %v2473 = vld [vmem:[#allocation10 + $0x24] sm:$0xf]
        %v2474 = vld [vmem:[#allocation10 + $0x28] sm:$0xf]
        %v2475 = vld [vmem:[#allocation10 + $0x2c] sm:$0xf]
        %v2476 = vld [vmem:[#allocation10 + $0x30] sm:$0xf]
        %v2477 = vld [vmem:[#allocation10 + $0x34] sm:$0xf]
        %v2478 = vld [vmem:[#allocation10 + $0x38] sm:$0xf]
        %v2479 = vld [vmem:[#allocation10 + $0x3c] sm:$0xf]
        %v2480 = vld [vmem:[#allocation10 + $0x40] sm:$0xf]
        %v2481 = vld [vmem:[#allocation10 + $0x44] sm:$0xf]
        %v2482 = vld [vmem:[#allocation10 + $0x48] sm:$0xf]
        %v2483 = vld [vmem:[#allocation10 + $0x4c] sm:$0xf]
        %v2484 = vld [vmem:[#allocation10 + $0x50] sm:$0xf]
        %v2485 = vld [vmem:[#allocation10 + $0x54] sm:$0xf]
        %v2486 = vld [vmem:[#allocation10 + $0x58] sm:$0xf]
        %v2487 = vld [vmem:[#allocation10 + $0x5c] sm:$0xf]
        %v2488 = vld [vmem:[#allocation10 + $0x60] sm:$0xf]
        %v2489 = vld [vmem:[#allocation10 + $0x64] sm:$0xf]
        %v2490 = vld [vmem:[#allocation10 + $0x68] sm:$0xf]
        %v2491 = vld [vmem:[#allocation10 + $0x6c] sm:$0xf]
        %v2492 = vld [vmem:[#allocation10 + $0x70] sm:$0xf]
        %v2493 = vld [vmem:[#allocation10 + $0x74] sm:$0xf]
        %v2494 = vld [vmem:[#allocation10 + $0x78] sm:$0xf]
        %v2495 = vld [vmem:[#allocation10 + $0x7c] sm:$0xf]
        %v2496 = vld [vmem:[#allocation10 + $0x80] sm:$0xf]
        %v2497 = vld [vmem:[#allocation10 + $0x84] sm:$0xf]
        %v2498 = vld [vmem:[#allocation10 + $0x88] sm:$0xf]
        %v2499 = vld [vmem:[#allocation10 + $0x8c] sm:$0xf]
        %v2500 = vld [vmem:[#allocation10 + $0x90] sm:$0xf]
        %v2501 = vld [vmem:[#allocation10 + $0x94] sm:$0xf]
        %v2502 = vld [vmem:[#allocation10 + $0x98] sm:$0xf]
        %v2503 = vld [vmem:[#allocation10 + $0x9c] sm:$0xf]
        %v2504 = vld [vmem:[#allocation10 + $0xa0] sm:$0xf]
        %v2505 = vld [vmem:[#allocation10 + $0xa4] sm:$0xf]
        %v2506 = vld [vmem:[#allocation10 + $0xa8] sm:$0xf]
        %v2507 = vld [vmem:[#allocation10 + $0xac] sm:$0xf]
        %v2508 = vld [vmem:[#allocation10 + $0xb0] sm:$0xf]
        %v2509 = vld [vmem:[#allocation10 + $0xb4] sm:$0xf]
        %v2510 = vld [vmem:[#allocation10 + $0xb8] sm:$0xf]
        %v2511 = vld [vmem:[#allocation10 + $0xbc] sm:$0xf]
        %v2512 = vld [vmem:[#allocation10 + $0xc0] sm:$0xf]
        %v2513 = vld [vmem:[#allocation10 + $0xc4] sm:$0xf]
        %v2514 = vld [vmem:[#allocation10 + $0xc8] sm:$0xf]
        %v2515 = vld [vmem:[#allocation10 + $0xcc] sm:$0xf]
        %v2516 = vld [vmem:[#allocation10 + $0xd0] sm:$0xf]
        %v2517 = vld [vmem:[#allocation10 + $0xd4] sm:$0xf]
        %v2518 = vld [vmem:[#allocation10 + $0xd8] sm:$0xf]
        %v2519 = vld [vmem:[#allocation10 + $0xdc] sm:$0xf]
        %v2520 = vld [vmem:[#allocation10 + $0xe0] sm:$0xf]
        %v2521 = vld [vmem:[#allocation10 + $0xe4] sm:$0xf]
        %v2522 = vld [vmem:[#allocation10 + $0xe8] sm:$0xf]
        %v2523 = vld [vmem:[#allocation10 + $0xec] sm:$0xf]
        %v2524 = vld [vmem:[#allocation10 + $0xf0] sm:$0xf]
        %v2525 = vld [vmem:[#allocation10 + $0xf4] sm:$0xf]
        %v2526 = vld [vmem:[#allocation10 + $0xf8] sm:$0xf]
        %v2527 = vld [vmem:[#allocation10 + $0xfc] sm:$0xf]
        %v2528 = vld [vmem:[%s6] sm:$0x1]
        %v2530 = vperm.slane %v2528, 0
        %v2596 = vunpack.c.l.b16 %v2464
        %v2597 = vunpack.c.l.b16 %v2465
        %v2598 = vunpack.c.l.b16 %v2466
        %v2599 = vunpack.c.l.b16 %v2467
        %v2600 = vunpack.c.l.b16 %v2468
        %v2601 = vunpack.c.l.b16 %v2469
        %v2602 = vunpack.c.l.b16 %v2470
        %v2603 = vunpack.c.l.b16 %v2471
        %v2604 = vunpack.c.l.b16 %v2472
        %v2605 = vunpack.c.l.b16 %v2473
        %v2606 = vunpack.c.l.b16 %v2474
        %v2607 = vunpack.c.l.b16 %v2475
        %v2608 = vunpack.c.l.b16 %v2476
        %v2609 = vunpack.c.l.b16 %v2477
        %v2610 = vunpack.c.l.b16 %v2478
        %v2611 = vunpack.c.l.b16 %v2479
        %v2612 = vunpack.c.l.b16 %v2480
        %v2613 = vunpack.c.l.b16 %v2481
        %v2614 = vunpack.c.l.b16 %v2482
        %v2615 = vunpack.c.l.b16 %v2483
        %v2616 = vunpack.c.l.b16 %v2484
        %v2617 = vunpack.c.l.b16 %v2485
        %v2618 = vunpack.c.l.b16 %v2486
        %v2619 = vunpack.c.l.b16 %v2487
        %v2620 = vunpack.c.l.b16 %v2488
        %v2621 = vunpack.c.l.b16 %v2489
        %v2622 = vunpack.c.l.b16 %v2490
        %v2623 = vunpack.c.l.b16 %v2491
        %v2624 = vunpack.c.l.b16 %v2492
        %v2625 = vunpack.c.l.b16 %v2493
        %v2626 = vunpack.c.l.b16 %v2494
        %v2627 = vunpack.c.l.b16 %v2495
        %v2628 = vunpack.c.l.b16 %v2496
        %v2629 = vunpack.c.l.b16 %v2497
        %v2630 = vunpack.c.l.b16 %v2498
        %v2631 = vunpack.c.l.b16 %v2499
        %v2632 = vunpack.c.l.b16 %v2500
        %v2633 = vunpack.c.l.b16 %v2501
        %v2634 = vunpack.c.l.b16 %v2502
        %v2635 = vunpack.c.l.b16 %v2503
        %v2636 = vunpack.c.l.b16 %v2504
        %v2637 = vunpack.c.l.b16 %v2505
        %v2638 = vunpack.c.l.b16 %v2506
        %v2639 = vunpack.c.l.b16 %v2507
        %v2640 = vunpack.c.l.b16 %v2508
        %v2641 = vunpack.c.l.b16 %v2509
        %v2642 = vunpack.c.l.b16 %v2510
        %v2643 = vunpack.c.l.b16 %v2511
        %v2644 = vunpack.c.l.b16 %v2512
        %v2645 = vunpack.c.l.b16 %v2513
        %v2646 = vunpack.c.l.b16 %v2514
        %v2647 = vunpack.c.l.b16 %v2515
        %v2648 = vunpack.c.l.b16 %v2516
        %v2649 = vunpack.c.l.b16 %v2517
        %v2650 = vunpack.c.l.b16 %v2518
        %v2651 = vunpack.c.l.b16 %v2519
        %v2652 = vunpack.c.l.b16 %v2520
        %v2653 = vunpack.c.l.b16 %v2521
        %v2654 = vunpack.c.l.b16 %v2522
        %v2655 = vunpack.c.l.b16 %v2523
        %v2656 = vunpack.c.l.b16 %v2524
        %v2657 = vunpack.c.l.b16 %v2525
        %v2658 = vunpack.c.l.b16 %v2526
        %v2659 = vunpack.c.l.b16 %v2527
        %v2660 = vpack.c.b16 %v2597, %v2596
        %v2661 = vpack.c.b16 %v2599, %v2598
        %v2662 = vpack.c.b16 %v2601, %v2600
        %v2663 = vpack.c.b16 %v2603, %v2602
        %v2664 = vpack.c.b16 %v2605, %v2604
        %v2665 = vpack.c.b16 %v2607, %v2606
        %v2666 = vpack.c.b16 %v2609, %v2608
        %v2667 = vpack.c.b16 %v2611, %v2610
        %v2668 = vpack.c.b16 %v2613, %v2612
        %v2669 = vpack.c.b16 %v2615, %v2614
        %v2670 = vpack.c.b16 %v2617, %v2616
        %v2671 = vpack.c.b16 %v2619, %v2618
        %v2672 = vpack.c.b16 %v2621, %v2620
        %v2673 = vpack.c.b16 %v2623, %v2622
        %v2674 = vpack.c.b16 %v2625, %v2624
        %v2675 = vpack.c.b16 %v2627, %v2626
        %v2676 = vpack.c.b16 %v2629, %v2628
        %v2677 = vpack.c.b16 %v2631, %v2630
        %v2678 = vpack.c.b16 %v2633, %v2632
        %v2679 = vpack.c.b16 %v2635, %v2634
        %v2680 = vpack.c.b16 %v2637, %v2636
        %v2681 = vpack.c.b16 %v2639, %v2638
        %v2682 = vpack.c.b16 %v2641, %v2640
        %v2683 = vpack.c.b16 %v2643, %v2642
        %v2684 = vpack.c.b16 %v2645, %v2644
        %v2685 = vpack.c.b16 %v2647, %v2646
        %v2686 = vpack.c.b16 %v2649, %v2648
        %v2687 = vpack.c.b16 %v2651, %v2650
        %v2688 = vpack.c.b16 %v2653, %v2652
        %v2689 = vpack.c.b16 %v2655, %v2654
        %v2690 = vpack.c.b16 %v2657, %v2656
        %v2691 = vpack.c.b16 %v2659, %v2658
        %2724 = vmatpush.bf16.msra.mxu0 %v2667
        %2725 = vmatpush.bf16.msra.mxu0 %v2666
        %2726 = vmatpush.bf16.msra.mxu0 %v2665
        %2727 = vmatpush.bf16.msra.mxu0 %v2664
        %2728 = vmatpush.bf16.msra.mxu0 %v2663
        %2729 = vmatpush.bf16.msra.mxu0 %v2662
        %2730 = vmatpush.bf16.msra.mxu0 %v2661
        %2731 = vmatpush.bf16.msra.mxu0 %v2660
        %2732 = vmatmul.bf16.gmra.mxu0 %v2432
        %v2733 = vpop.f32.mrf.mxu0
        %v2734 = vadd.f32 %v2530, %v2733
        %v2735 = vpop.f32.mrf.mxu0
        %v2736 = vadd.f32 %v2530, %v2735
        %2737 = vmatmul.bf16.gmra.mxu0 %v2436
        %v2738 = vpop.f32.mrf.mxu0
        %v2739 = vadd.f32 %v2530, %v2738
        %v2740 = vpop.f32.mrf.mxu0
        %v2741 = vadd.f32 %v2530, %v2740
        %2742 = vmatmul.bf16.gmra.mxu0 %v2440
        %v2743 = vpop.f32.mrf.mxu0
        %v2744 = vadd.f32 %v2530, %v2743
        %v2745 = vpop.f32.mrf.mxu0
        %v2746 = vadd.f32 %v2530, %v2745
        %2747 = vmatmul.bf16.gmra.mxu0 %v2444
        %v2748 = vpop.f32.mrf.mxu0
        %v2749 = vadd.f32 %v2530, %v2748
        %v2750 = vpop.f32.mrf.mxu0
        %v2751 = vadd.f32 %v2530, %v2750
        %2752 = vmatmul.bf16.gmra.mxu0 %v2448
        %v2753 = vpop.f32.mrf.mxu0
        %v2754 = vadd.f32 %v2530, %v2753
        %v2755 = vpop.f32.mrf.mxu0
        %v2756 = vadd.f32 %v2530, %v2755
        %2757 = vmatmul.bf16.gmra.mxu0 %v2452
        %v2758 = vpop.f32.mrf.mxu0
        %v2759 = vadd.f32 %v2530, %v2758
        %v2760 = vpop.f32.mrf.mxu0
        %v2761 = vadd.f32 %v2530, %v2760
        %2762 = vmatmul.bf16.gmra.mxu0 %v2456
        %v2763 = vpop.f32.mrf.mxu0
        %v2764 = vadd.f32 %v2530, %v2763
        %v2765 = vpop.f32.mrf.mxu0
        %v2766 = vadd.f32 %v2530, %v2765
        %2767 = vmatmul.bf16.gmra.mxu0 %v2460
        %v2768 = vpop.f32.mrf.mxu0
        %v2769 = vadd.f32 %v2530, %v2768
        %v2770 = vpop.f32.mrf.mxu0
        %v2771 = vadd.f32 %v2530, %v2770
        %2772 = vdwg.mxu0
        %2773 = vmatpush.bf16.msra.mxu0 %v2675
        %2774 = vmatpush.bf16.msra.mxu0 %v2674
        %2775 = vmatpush.bf16.msra.mxu0 %v2673
        %2776 = vmatpush.bf16.msra.mxu0 %v2672
        %2777 = vmatpush.bf16.msra.mxu0 %v2671
        %2778 = vmatpush.bf16.msra.mxu0 %v2670
        %2779 = vmatpush.bf16.msra.mxu0 %v2669
        %2780 = vmatpush.bf16.msra.mxu0 %v2668
        %2781 = vmatmul.bf16.gmra.mxu0 %v2433
        %v2782 = vpop.f32.mrf.mxu0
        %v2783 = vadd.f32 %v2734, %v2782
        %v2784 = vpop.f32.mrf.mxu0
        %v2785 = vadd.f32 %v2736, %v2784
        %2786 = vmatmul.bf16.gmra.mxu0 %v2437
        %v2787 = vpop.f32.mrf.mxu0
        %v2788 = vadd.f32 %v2739, %v2787
        %v2789 = vpop.f32.mrf.mxu0
        %v2790 = vadd.f32 %v2741, %v2789
        %2791 = vmatmul.bf16.gmra.mxu0 %v2441
        %v2792 = vpop.f32.mrf.mxu0
        %v2793 = vadd.f32 %v2744, %v2792
        %v2794 = vpop.f32.mrf.mxu0
        %v2795 = vadd.f32 %v2746, %v2794
        %2796 = vmatmul.bf16.gmra.mxu0 %v2445
        %v2797 = vpop.f32.mrf.mxu0
        %v2798 = vadd.f32 %v2749, %v2797
        %v2799 = vpop.f32.mrf.mxu0
        %v2800 = vadd.f32 %v2751, %v2799
        %2801 = vmatmul.bf16.gmra.mxu0 %v2449
        %v2802 = vpop.f32.mrf.mxu0
        %v2803 = vadd.f32 %v2754, %v2802
        %v2804 = vpop.f32.mrf.mxu0
        %v2805 = vadd.f32 %v2756, %v2804
        %2806 = vmatmul.bf16.gmra.mxu0 %v2453
        %v2807 = vpop.f32.mrf.mxu0
        %v2808 = vadd.f32 %v2759, %v2807
        %v2809 = vpop.f32.mrf.mxu0
        %v2810 = vadd.f32 %v2761, %v2809
        %2811 = vmatmul.bf16.gmra.mxu0 %v2457
        %v2812 = vpop.f32.mrf.mxu0
        %v2813 = vadd.f32 %v2764, %v2812
        %v2814 = vpop.f32.mrf.mxu0
        %v2815 = vadd.f32 %v2766, %v2814
        %2816 = vmatmul.bf16.gmra.mxu0 %v2461
        %v2817 = vpop.f32.mrf.mxu0
        %v2818 = vadd.f32 %v2769, %v2817
        %v2819 = vpop.f32.mrf.mxu0
        %v2820 = vadd.f32 %v2771, %v2819
        %2821 = vdwg.mxu0
        %2822 = vmatpush.bf16.msra.mxu0 %v2683
        %2823 = vmatpush.bf16.msra.mxu0 %v2682
        %2824 = vmatpush.bf16.msra.mxu0 %v2681
        %2825 = vmatpush.bf16.msra.mxu0 %v2680
        %2826 = vmatpush.bf16.msra.mxu0 %v2679
        %2827 = vmatpush.bf16.msra.mxu0 %v2678
        %2828 = vmatpush.bf16.msra.mxu0 %v2677
        %2829 = vmatpush.bf16.msra.mxu0 %v2676
        %2830 = vmatmul.bf16.gmra.mxu0 %v2434
        %v2831 = vpop.f32.mrf.mxu0
        %v2832 = vadd.f32 %v2783, %v2831
        %v2833 = vpop.f32.mrf.mxu0
        %v2834 = vadd.f32 %v2785, %v2833
        %2835 = vmatmul.bf16.gmra.mxu0 %v2438
        %v2836 = vpop.f32.mrf.mxu0
        %v2837 = vadd.f32 %v2788, %v2836
        %v2838 = vpop.f32.mrf.mxu0
        %v2839 = vadd.f32 %v2790, %v2838
        %2840 = vmatmul.bf16.gmra.mxu0 %v2442
        %v2841 = vpop.f32.mrf.mxu0
        %v2842 = vadd.f32 %v2793, %v2841
        %v2843 = vpop.f32.mrf.mxu0
        %v2844 = vadd.f32 %v2795, %v2843
        %2845 = vmatmul.bf16.gmra.mxu0 %v2446
        %v2846 = vpop.f32.mrf.mxu0
        %v2847 = vadd.f32 %v2798, %v2846
        %v2848 = vpop.f32.mrf.mxu0
        %v2849 = vadd.f32 %v2800, %v2848
        %2850 = vmatmul.bf16.gmra.mxu0 %v2450
        %v2851 = vpop.f32.mrf.mxu0
        %v2852 = vadd.f32 %v2803, %v2851
        %v2853 = vpop.f32.mrf.mxu0
        %v2854 = vadd.f32 %v2805, %v2853
        %2855 = vmatmul.bf16.gmra.mxu0 %v2454
        %v2856 = vpop.f32.mrf.mxu0
        %v2857 = vadd.f32 %v2808, %v2856
        %v2858 = vpop.f32.mrf.mxu0
        %v2859 = vadd.f32 %v2810, %v2858
        %2860 = vmatmul.bf16.gmra.mxu0 %v2458
        %v2861 = vpop.f32.mrf.mxu0
        %v2862 = vadd.f32 %v2813, %v2861
        %v2863 = vpop.f32.mrf.mxu0
        %v2864 = vadd.f32 %v2815, %v2863
        %2865 = vmatmul.bf16.gmra.mxu0 %v2462
        %v2866 = vpop.f32.mrf.mxu0
        %v2867 = vadd.f32 %v2818, %v2866
        %v2868 = vpop.f32.mrf.mxu0
        %v2869 = vadd.f32 %v2820, %v2868
        %2870 = vdwg.mxu0
        %2871 = vmatpush.bf16.msra.mxu0 %v2691
        %2872 = vmatpush.bf16.msra.mxu0 %v2690
        %2873 = vmatpush.bf16.msra.mxu0 %v2689
        %2874 = vmatpush.bf16.msra.mxu0 %v2688
        %2875 = vmatpush.bf16.msra.mxu0 %v2687
        %2876 = vmatpush.bf16.msra.mxu0 %v2686
        %2877 = vmatpush.bf16.msra.mxu0 %v2685
        %2878 = vmatpush.bf16.msra.mxu0 %v2684
        %2879 = vmatmul.bf16.gmra.mxu0 %v2435
        %v2880 = vpop.f32.mrf.mxu0
        %v2881 = vadd.f32 %v2832, %v2880
        %v2882 = vpop.f32.mrf.mxu0
        %v2883 = vadd.f32 %v2834, %v2882
        %2884 = vmatmul.bf16.gmra.mxu0 %v2439
        %v2885 = vpop.f32.mrf.mxu0
        %v2886 = vadd.f32 %v2837, %v2885
        %v2887 = vpop.f32.mrf.mxu0
        %v2888 = vadd.f32 %v2839, %v2887
        %2889 = vmatmul.bf16.gmra.mxu0 %v2443
        %v2890 = vpop.f32.mrf.mxu0
        %v2891 = vadd.f32 %v2842, %v2890
        %v2892 = vpop.f32.mrf.mxu0
        %v2893 = vadd.f32 %v2844, %v2892
        %2894 = vmatmul.bf16.gmra.mxu0 %v2447
        %v2895 = vpop.f32.mrf.mxu0
        %v2896 = vadd.f32 %v2847, %v2895
        %v2897 = vpop.f32.mrf.mxu0
        %v2898 = vadd.f32 %v2849, %v2897
        %2899 = vmatmul.bf16.gmra.mxu0 %v2451
        %v2900 = vpop.f32.mrf.mxu0
        %v2901 = vadd.f32 %v2852, %v2900
        %v2902 = vpop.f32.mrf.mxu0
        %v2903 = vadd.f32 %v2854, %v2902
        %2904 = vmatmul.bf16.gmra.mxu0 %v2455
        %v2905 = vpop.f32.mrf.mxu0
        %v2906 = vadd.f32 %v2857, %v2905
        %v2907 = vpop.f32.mrf.mxu0
        %v2908 = vadd.f32 %v2859, %v2907
        %2909 = vmatmul.bf16.gmra.mxu0 %v2459
        %v2910 = vpop.f32.mrf.mxu0
        %v2911 = vadd.f32 %v2862, %v2910
        %v2912 = vpop.f32.mrf.mxu0
        %v2913 = vadd.f32 %v2864, %v2912
        %2914 = vmatmul.bf16.gmra.mxu0 %v2463
        %v2915 = vpop.f32.mrf.mxu0
        %v2916 = vadd.f32 %v2867, %v2915
        %v2917 = vpop.f32.mrf.mxu0
        %v2918 = vadd.f32 %v2869, %v2917
        %2919 = vdwg.mxu0
        %2920 = vst [vmem:[%s360] sm:$0xff] %v2881
        %2921 = vst [vmem:[%s360 + $0x8] sm:$0xff] %v2883
        %2922 = vst [vmem:[%s360 + $0x10] sm:$0xff] %v2886
        %2923 = vst [vmem:[%s360 + $0x18] sm:$0xff] %v2888
        %2924 = vst [vmem:[%s360 + $0x20] sm:$0xff] %v2891
        %2925 = vst [vmem:[%s360 + $0x28] sm:$0xff] %v2893
        %2926 = vst [vmem:[%s360 + $0x30] sm:$0xff] %v2896
        %2927 = vst [vmem:[%s360 + $0x38] sm:$0xff] %v2898
        %2928 = vst [vmem:[%s360 + $0x40] sm:$0xff] %v2901
        %2929 = vst [vmem:[%s360 + $0x48] sm:$0xff] %v2903
        %2930 = vst [vmem:[%s360 + $0x50] sm:$0xff] %v2906
        %2931 = vst [vmem:[%s360 + $0x58] sm:$0xff] %v2908
        %2932 = vst [vmem:[%s360 + $0x60] sm:$0xff] %v2911
        %2933 = vst [vmem:[%s360 + $0x68] sm:$0xff] %v2913
        %2934 = vst [vmem:[%s360 + $0x70] sm:$0xff] %v2916
        %2935 = vst [vmem:[%s360 + $0x78] sm:$0xff] %v2918
        %s2936 = sand.u32 %s186, 1
        %s2937 = scalar_lea.sflag [#allocation4], %s2936
        %s2938 = sand.u32 %s186, 1
        %s2939 = smul.addr %s2938, 128
        %s2940 = scalar_lea.vmem [#allocation11], %s2939
        // Predicated region
        $region69: #{tpu_custom_call.1} parent=47 // pred_check
          %p2941 = pneg %p196
        $region70: #{tpu_custom_call.1} parent=47 // pred_check_branch
          %2943 = sbr.rel (%p2941) target = $region72
        $region71: #{tpu_custom_call.1} parent=47 // pred_region
          %s2944 = smul.u32 16, %s26
          %2946 = vsyncadd %s2937, 0
          %s2947 = smul.addr %s2944, 8
          %s2948 = scalar_lea.hbm %s7, %s2947
          %s2949 = sshll.u32 %s2940, 4
          %s2950 = int_to_ptr.vmem [resolvable:$true] %s2949
          %s2951 = sshll.u32 %s2948, 4
          %s2952 = int_to_ptr.hbm [resolvable:$true] %s2951
          %2957 = dma.vmem_to_hbm [thread:$0]  %s2950, 2048, %s2952, %s2937, 128, 128, 8
        $region72: #{tpu_custom_call.1} parent=47 // pred_fallthru
          _
      $region48: #{tpu_custom_call.1} parent=5 // pred_fallthru
        _
      %p2958 = scmp.le.s32.totalorder 2, %s21
      // Predicated region
      $region73: #{tpu_custom_call.1} parent=5 // pred_check
        %p2959 = pneg %p2958
      $region74: #{tpu_custom_call.1} parent=5 // pred_check_branch
        %2961 = sbr.rel (%p2959) target = $region76
      $region75: #{tpu_custom_call.1} parent=5 // pred_region
        %s2962 = ssub.s32 %s21, 2
        // Predicated region
        $region77: #{tpu_custom_call.1} parent=75 // pred_check
          %p2963 = pneg %p202
        $region78: #{tpu_custom_call.1} parent=75 // pred_check_branch
          %2965 = sbr.rel (%p2963) target = $region80
        $region79: #{tpu_custom_call.1} parent=75 // pred_region
          %s2966 = sand.u32 %s187, 1
          %s2967 = scalar_lea.sflag [#allocation4], %s2966
          %s2968 = sand.u32 %s187, 1
          %s2969 = smul.addr %s2968, 128
          %s2970 = scalar_lea.vmem [#allocation11], %s2969
          %2972 = dma.done %s2967, 2048
        $region80: #{tpu_custom_call.1} parent=75 // pred_fallthru
          _
      $region76: #{tpu_custom_call.1} parent=5 // pred_fallthru
        _
    $region6: #{tpu_custom_call.1} parent=1 // loop_footer
      %s25 = sadd.s32 1, %s21
    $region7: #{tpu_custom_call.1} parent=1 // loop_footer_branch
      %20 = sbr.rel target = $region3
    $region8: #{tpu_custom_call.1} parent=1 // loop_exit
      _
    %2973 = vsyncpa [#allocation3], 1
    %s2974 = scalar_lea.sflag [#allocation3], 1
    %2975 = vsyncpa %s2974, 1
    %2976 = vsyncpa [#allocation6], 1
    %2977 = vsyncpa [#allocation9], 1
    %2978 = vsyncpa [#allocation4], 1
    %s2979 = scalar_lea.sflag [#allocation4], 1
    %2980 = vsyncpa %s2979, 1

</llo_original>
